<compile_context>
chip_gen: v7x
topology: tpu7x:2x2x1
jax: 0.10.0
libtpu: 0.0.40
codegen_flags: <defaults>
</compile_context>

<pallas_src>
import jax
import jax.numpy as jnp
from jax.experimental import pallas as pl
from jax.experimental.pallas import tpu as pltpu


def _pick_tile(n: int, target: int = 512) -> int:
    """Largest tile <= target that divides n and keeps the lane axis 128-aligned."""
    if n <= target:
        return n
    t = (target // 128) * 128
    while t >= 128:
        if n % t == 0:
            return t
        t -= 128
    return n  # fallback: single full-extent block


def _make_attention_kernel(fuse_qk: bool, C: int):
    """Build the flash-style self-attention kernel body.

    fuse_qk: True  -> scores contract over C     (aq = Wk^T Wq, keys = x)
             False -> scores contract over C//8  (aq = Wq,      keys = Wk x)
    """

    def kernel(xq_ref, xkv_ref, aq_ref, bq_ref, ak_ref, wv_ref, bv_ref,
               gamma_ref, o_ref, m_sc, acc_sc):
        j = pl.program_id(2)

        @pl.when(j == 0)
        def _init():
            m_sc[...] = jnp.full(m_sc.shape, -jnp.inf, jnp.float32)
            acc_sc[...] = jnp.zeros(acc_sc.shape, jnp.float32)

        x_q = xq_ref[0]                          # (C, tq) f32, queries on lanes
        x_kv = xkv_ref[0]                        # (C, tk) f32, keys on lanes
        xq_b = x_q.astype(jnp.bfloat16)
        xkv_b = x_kv.astype(jnp.bfloat16)

        # Query-side projection g = Aq x_q + b: (d, tq), bf16 operands, f32 acc.
        g = jnp.dot(aq_ref[...], xq_b,
                    preferred_element_type=jnp.float32) + bq_ref[...]

        # Key-side features. Fused path uses x directly (depth C, one MXU pass
        # for C <= 128); low-rank path first projects to C//8.
        if fuse_qk:
            kgt = jnp.transpose(x_kv)            # (tk, C)
        else:
            kg = jnp.dot(ak_ref[...], xkv_b,
                         preferred_element_type=jnp.float32)     # (C//8, tk)
            kgt = jnp.transpose(kg)              # (tk, C//8)

        # Transposed scores s_t[j_pix, i_pix]: keys on sublanes, queries on
        # lanes -> softmax statistics come out lane-dense.
        s_t = jnp.dot(kgt.astype(jnp.bfloat16), g.astype(jnp.bfloat16),
                      preferred_element_type=jnp.float32)        # (tk, tq)

        # Online (flash) softmax over the key axis (sublanes), f32 statistics.
        m_prev = m_sc[...]                                       # (1, tq)
        m_new = jnp.maximum(m_prev, jnp.max(s_t, axis=0, keepdims=True))
        alpha = jnp.exp(m_prev - m_new)                          # (1, tq)
        p = jnp.exp(s_t - m_new)                                 # (tk, tq) f32

        # Augmented value projection: last row of wv_ref is all zeros with
        # bias 1.0, so v_aug[C, :] == 1 and the softmax row-sum rides along in
        # the same attn@V MXU pass (no separate ones@p matmul).
        v_aug = jnp.dot(wv_ref[...], xkv_b,
                        preferred_element_type=jnp.float32) + bv_ref[...]   # (C+1, tk)
        pv = jnp.dot(v_aug.astype(jnp.bfloat16), p.astype(jnp.bfloat16),
                     preferred_element_type=jnp.float32)         # (C+1, tq)

        acc_sc[...] = alpha * acc_sc[...] + pv   # rows [:C] = out_un, row [C] = l
        m_sc[...] = m_new

        @pl.when(j == pl.num_programs(2) - 1)
        def _finalize():
            acc = acc_sc[...]                                    # (C+1, tq)
            inv_l = pl.reciprocal(acc[C:C + 1, :], approx=True)  # (1, tq) on EUP
            gamma = gamma_ref[0]                                 # SMEM scalar
            o_ref[0] = (gamma * (acc[:C, :] * inv_l) + x_q).astype(o_ref.dtype)

    return kernel


def self_attention_pallas(x_nchw, wq, bq, wk, bk, wv, bv, gamma,
                          *, tile_target: int = 512):
    """SAGAN self-attention forward pass.

    x_nchw: (B, C, H, W) float32.
    wq, wk: (C//8, C); bq, bk: (C//8,); wv: (C, C); bv: (C,); gamma: (1,)
    (1x1 conv weights in torch (out_ch, in_ch) layout, kernel dims squeezed).
    Returns (B, C, H, W) float32.
    """
    B, C, H, W = x_nchw.shape
    N = H * W

    # Free reshape, identical to torch's .view(B, C, H*W): no HBM transpose.
    x_cn = x_nchw.reshape(B, C, N)

    # --- parameter-only precompute (done once, outside the grid) -----------
    # softmax_j(q_i . k_j) depends only on (Wk x_j) . (Wq x_i + bq); bk and all
    # j-independent terms drop out.  For C <= 128 fuse Wk into the query side
    # (removes one in-kernel projection; contraction depth C is still a single
    # MXU pass).  For wider C keep the low-rank form (depth C//8).
    fuse_qk = C <= 128
    if fuse_qk:
        aq = (wk.T @ wq).astype(jnp.bfloat16)                      # (C, C)
        bq_eff = (wk.T @ bq).reshape(C, 1).astype(jnp.float32)     # (C, 1)
    else:
        aq = wq.astype(jnp.bfloat16)                               # (C//8, C)
        bq_eff = bq.reshape(-1, 1).astype(jnp.float32)
    ak = wk.astype(jnp.bfloat16)            # only used by the low-rank path
    del bk                                  # j-independent -> drops under softmax

    # Augmented value projection (folds the softmax row-sum into attn@V).
    wv_aug = jnp.concatenate([wv, jnp.zeros((1, C), wv.dtype)],
                             axis=0).astype(jnp.bfloat16)          # (C+1, C)
    bv_aug = jnp.concatenate([bv, jnp.ones((1,), bv.dtype)]
                             ).reshape(C + 1, 1).astype(jnp.float32)
    gamma1 = jnp.asarray(gamma, jnp.float32).reshape(1)

    tq = _pick_tile(N, tile_target)          # query-pixel tile (lane-dense)
    tk = _pick_tile(N, tile_target)          # key/value-pixel tile
    d = aq.shape[0]                          # score contraction depth

    kernel = _make_attention_kernel(fuse_qk, C)

    cost = pl.CostEstimate(
        flops=int(2 * B * N * N * (d + C + 1) + 4 * B * N * C * (C + d)),
        transcendentals=int(B * N * N),
        bytes_accessed=int(4 * B * C * N * (2 + N // tq)),
    )

    out_cn = pl.pallas_call(
        kernel,
        out_shape=jax.ShapeDtypeStruct((B, C, N), jnp.float32),
        grid_spec=pltpu.PrefetchScalarGridSpec(
            num_scalar_prefetch=0,
            grid=(B, N // tq, N // tk),       # key/value axis last ("arbitrary")
            in_specs=[
                pl.BlockSpec((1, C, tq), lambda b, i, j: (b, 0, i)),   # x query tile
                pl.BlockSpec((1, C, tk), lambda b, i, j: (b, 0, j)),   # x key/value tile
                pl.BlockSpec((d, C), lambda b, i, j: (0, 0)),          # aq (bf16)
                pl.BlockSpec((d, 1), lambda b, i, j: (0, 0)),          # bq_eff (f32)
                pl.BlockSpec((C // 8, C), lambda b, i, j: (0, 0)),     # ak = Wk (bf16)
                pl.BlockSpec((C + 1, C), lambda b, i, j: (0, 0)),      # Wv augmented (bf16)
                pl.BlockSpec((C + 1, 1), lambda b, i, j: (0, 0)),      # bv augmented (f32)
                pl.BlockSpec(memory_space=pltpu.MemorySpace.SMEM),     # gamma scalar
            ],
            out_specs=pl.BlockSpec((1, C, tq), lambda b, i, j: (b, 0, i)),
            scratch_shapes=[
                pltpu.VMEM((1, tq), jnp.float32),      # running row max
                pltpu.VMEM((C + 1, tq), jnp.float32),  # running out_un + row-sum
            ],
        ),
        compiler_params=pltpu.CompilerParams(
            # batch and query-tile axes shard across cores; key axis is the
            # sequential online-softmax reduction.
            dimension_semantics=("parallel", "parallel", "arbitrary")),
        cost_estimate=cost,
    )(x_cn, x_cn, aq, bq_eff, ak, wv_aug, bv_aug, gamma1)

    return out_cn.reshape(B, C, H, W)


if __name__ == "__main__":
    # Small shapes consistent with the module: in_dim=16 -> in_dim//8 = 2,
    # spatial 16x16 -> N = 256 (multiple of the 128-lane width).
    B, C, H, W = 2, 16, 16, 16
    C8 = C // 8
    N = H * W

    key = jax.random.PRNGKey(0)
    kx, kq, kbq, kk, kbk, kv, kbv = jax.random.split(key, 7)

    x = jax.random.normal(kx, (B, C, H, W), dtype=jnp.float32)

    # Conv weights in torch (out_ch, in_ch) layout (1x1 kernels squeezed).
    wq = jax.random.normal(kq, (C8, C), dtype=jnp.float32) * 0.1
    bq = jax.random.normal(kbq, (C8,), dtype=jnp.float32) * 0.1
    wk = jax.random.normal(kk, (C8, C), dtype=jnp.float32) * 0.1
    bk = jax.random.normal(kbk, (C8,), dtype=jnp.float32) * 0.1
    wv = jax.random.normal(kv, (C, C), dtype=jnp.float32) * 0.1
    bv = jax.random.normal(kbv, (C,), dtype=jnp.float32) * 0.1
    # The module inits gamma=0 (output == x); use a nonzero value here so the
    # attention path is actually exercised in this synthetic run.
    gamma = jnp.array([0.5], dtype=jnp.float32)

    out = self_attention_pallas(x, wq, bq, wk, bk, wv, bv, gamma)
    jax.block_until_ready(out)

    # Pure-JAX f32 reference using the ORIGINAL (unfused) formulation,
    # mirroring the torch module exactly — validates the fused-QK / folded
    # row-sum / flash-softmax math in the kernel.
    x_cn = x.reshape(B, C, N)
    q = jnp.einsum("dc,bcn->bdn", wq, x_cn) + bq[:, None]       # (B, C8, N)
    k = jnp.einsum("dc,bcn->bdn", wk, x_cn) + bk[:, None]       # (B, C8, N)
    v = jnp.einsum("dc,bcn->bdn", wv, x_cn) + bv[:, None]       # (B, C,  N)
    attn = jax.nn.softmax(jnp.einsum("bdi,bdj->bij", q, k), axis=-1)
    ref = gamma[0] * jnp.einsum("bcj,bij->bci", v, attn) + x_cn
    ref = ref.reshape(B, C, H, W)

    # Tolerance covers bf16 MXU operands (f32 accumulation), the fused-QK
    # reassociation, and the approximate EUP reciprocal.
    assert jnp.allclose(out, ref, atol=5e-3, rtol=5e-3), "mismatch vs reference"

    print("KERNEL_OK")
</pallas_src>

<mosaic_0001>
module attributes {stable_mosaic.version = 11 : i64} {
  func.func @kernel(%arg0: i32, %arg1: i32, %arg2: i32, %arg3: memref<1x16x256xf32, #tpu.memory_space<vmem>>, %arg4: memref<1x16x256xf32, #tpu.memory_space<vmem>>, %arg5: memref<16x16xbf16, #tpu.memory_space<vmem>>, %arg6: memref<16x1xf32, #tpu.memory_space<vmem>>, %arg7: memref<2x16xbf16, #tpu.memory_space<vmem>>, %arg8: memref<17x16xbf16, #tpu.memory_space<vmem>>, %arg9: memref<17x1xf32, #tpu.memory_space<vmem>>, %arg10: memref<1xf32, #tpu.memory_space<smem>>, %arg11: memref<1x16x256xf32, #tpu.memory_space<vmem>>, %arg12: memref<1x256xf32, #tpu.memory_space<vmem>>, %arg13: memref<17x256xf32, #tpu.memory_space<vmem>>) attributes {dimension_semantics = [#tpu.dimension_semantics<parallel>, #tpu.dimension_semantics<parallel>, #tpu.dimension_semantics<arbitrary>], iteration_bounds = array<i64: 2, 1, 1>, scalar_prefetch = 0 : i64, scratch_operands = 2 : i64, tpu.core_type = #tpu.core_type<tc>, window_params = [{transform_indices = @transform_0, window_bounds = array<i64: 1, 16, 256>}, {transform_indices = @transform_1, window_bounds = array<i64: 1, 16, 256>}, {pipeline_mode = #tpu.pipeline_mode<synchronous>, transform_indices = @transform_2, window_bounds = array<i64: 16, 16>}, {pipeline_mode = #tpu.pipeline_mode<synchronous>, transform_indices = @transform_3, window_bounds = array<i64: 16, 1>}, {pipeline_mode = #tpu.pipeline_mode<synchronous>, transform_indices = @transform_4, window_bounds = array<i64: 2, 16>}, {pipeline_mode = #tpu.pipeline_mode<synchronous>, transform_indices = @transform_5, window_bounds = array<i64: 17, 16>}, {pipeline_mode = #tpu.pipeline_mode<synchronous>, transform_indices = @transform_6, window_bounds = array<i64: 17, 1>}, {transform_indices = @transform_7, window_bounds = array<i64: 1>}, {transform_indices = @transform_8, window_bounds = array<i64: 1, 16, 256>}]} {
    %c0_i32 = arith.constant 0 : i32
    %0 = arith.cmpi eq, %arg2, %c0_i32 : i32
    %1 = arith.extui %0 : i1 to i32
    %c0_i32_0 = arith.constant 0 : i32
    %2 = arith.cmpi ne, %1, %c0_i32_0 : i32
    scf.if %2 {
      %cst_28 = arith.constant 0xFF800000 : f32
      %44 = vector.broadcast %cst_28 : f32 to vector<1x256xf32>
      %c0_29 = arith.constant 0 : index
      %c0_30 = arith.constant 0 : index
      %45 = vector.load %arg12[%c0_29, %c0_30] : memref<1x256xf32, #tpu.memory_space<vmem>>, vector<1x256xf32>
      tpu.vector_store %arg12[%c0_29, %c0_30], %44 {strides = array<i32>} : memref<1x256xf32, #tpu.memory_space<vmem>>, vector<1x256xf32>,
      %cst_31 = arith.constant 0.000000e+00 : f32
      %46 = vector.broadcast %cst_31 : f32 to vector<17x256xf32>
      %c0_32 = arith.constant 0 : index
      %c0_33 = arith.constant 0 : index
      %47 = vector.load %arg13[%c0_32, %c0_33] : memref<17x256xf32, #tpu.memory_space<vmem>>, vector<17x256xf32>
      tpu.vector_store %arg13[%c0_32, %c0_33], %46 {strides = array<i32>} : memref<17x256xf32, #tpu.memory_space<vmem>>, vector<17x256xf32>,
    } else {
    }
    %c0 = arith.constant 0 : index
    %c0_1 = arith.constant 0 : index
    %c0_2 = arith.constant 0 : index
    %3 = vector.load %arg3[%c0, %c0_1, %c0_2] : memref<1x16x256xf32, #tpu.memory_space<vmem>>, vector<1x16x256xf32>
    %4 = vector.shape_cast %3 : vector<1x16x256xf32> to vector<16x256xf32>
    %c0_3 = arith.constant 0 : index
    %c0_4 = arith.constant 0 : index
    %c0_5 = arith.constant 0 : index
    %5 = vector.load %arg4[%c0_3, %c0_4, %c0_5] : memref<1x16x256xf32, #tpu.memory_space<vmem>>, vector<1x16x256xf32>
    %6 = vector.shape_cast %5 : vector<1x16x256xf32> to vector<16x256xf32>
    %7 = arith.truncf %4 : vector<16x256xf32> to vector<16x256xbf16>
    %8 = arith.truncf %6 : vector<16x256xf32> to vector<16x256xbf16>
    %c0_6 = arith.constant 0 : index
    %c0_7 = arith.constant 0 : index
    %9 = vector.load %arg5[%c0_6, %c0_7] : memref<16x16xbf16, #tpu.memory_space<vmem>>, vector<16x16xbf16>
    %cst = arith.constant dense<0.000000e+00> : vector<16x256xf32>
    %10 = tpu.matmul %9, %7, %cst {dimension_numbers = #tpu.dot_dimension_numbers<[1], [0], [0], [1], [0, 0, 1, 1], [], []>} : vector<16x16xbf16>, vector<16x256xbf16>, vector<16x256xf32> -> vector<16x256xf32>
    %c0_8 = arith.constant 0 : index
    %c0_9 = arith.constant 0 : index
    %11 = vector.load %arg6[%c0_8, %c0_9] : memref<16x1xf32, #tpu.memory_space<vmem>>, vector<16x1xf32>
    %12 = vector.broadcast %11 : vector<16x1xf32> to vector<16x256xf32>
    %13 = arith.addf %10, %12 : vector<16x256xf32>
    %14 = tpu.transpose %6, [1, 0] : vector<16x256xf32> -> vector<256x16xf32>
    %15 = arith.truncf %14 : vector<256x16xf32> to vector<256x16xbf16>
    %16 = arith.truncf %13 : vector<16x256xf32> to vector<16x256xbf16>
    %cst_10 = arith.constant dense<0.000000e+00> : vector<256x256xf32>
    %17 = tpu.matmul %15, %16, %cst_10 {dimension_numbers = #tpu.dot_dimension_numbers<[1], [0], [0], [1], [0, 0, 1, 1], [], []>} : vector<256x16xbf16>, vector<16x256xbf16>, vector<256x256xf32> -> vector<256x256xf32>
    %c0_11 = arith.constant 0 : index
    %c0_12 = arith.constant 0 : index
    %18 = vector.load %arg12[%c0_11, %c0_12] : memref<1x256xf32, #tpu.memory_space<vmem>>, vector<1x256xf32>
    %cst_13 = arith.constant dense<0xFF800000> : vector<256xf32>
    %19 = vector.multi_reduction <maximumf>, %17, %cst_13 [0] : vector<256x256xf32> to vector<256xf32>
    %20 = vector.shape_cast %19 : vector<256xf32> to vector<1x256xf32>
    %21 = arith.maximumf %18, %20 : vector<1x256xf32>
    %22 = arith.subf %18, %21 : vector<1x256xf32>
    %23 = math.exp %22 : vector<1x256xf32>
    %24 = vector.broadcast %21 : vector<1x256xf32> to vector<256x256xf32>
    %25 = arith.subf %17, %24 : vector<256x256xf32>
    %26 = math.exp %25 : vector<256x256xf32>
    %c0_14 = arith.constant 0 : index
    %c0_15 = arith.constant 0 : index
    %27 = vector.load %arg8[%c0_14, %c0_15] : memref<17x16xbf16, #tpu.memory_space<vmem>>, vector<17x16xbf16>
    %cst_16 = arith.constant dense<0.000000e+00> : vector<17x256xf32>
    %28 = tpu.matmul %27, %8, %cst_16 {dimension_numbers = #tpu.dot_dimension_numbers<[1], [0], [0], [1], [0, 0, 1, 1], [], []>} : vector<17x16xbf16>, vector<16x256xbf16>, vector<17x256xf32> -> vector<17x256xf32>
    %c0_17 = arith.constant 0 : index
    %c0_18 = arith.constant 0 : index
    %29 = vector.load %arg9[%c0_17, %c0_18] : memref<17x1xf32, #tpu.memory_space<vmem>>, vector<17x1xf32>
    %30 = vector.broadcast %29 : vector<17x1xf32> to vector<17x256xf32>
    %31 = arith.addf %28, %30 : vector<17x256xf32>
    %32 = arith.truncf %31 : vector<17x256xf32> to vector<17x256xbf16>
    %33 = arith.truncf %26 : vector<256x256xf32> to vector<256x256xbf16>
    %cst_19 = arith.constant dense<0.000000e+00> : vector<17x256xf32>
    %34 = tpu.matmul %32, %33, %cst_19 {dimension_numbers = #tpu.dot_dimension_numbers<[1], [0], [0], [1], [0, 0, 1, 1], [], []>} : vector<17x256xbf16>, vector<256x256xbf16>, vector<17x256xf32> -> vector<17x256xf32>
    %c0_20 = arith.constant 0 : index
    %c0_21 = arith.constant 0 : index
    %35 = vector.load %arg13[%c0_20, %c0_21] : memref<17x256xf32, #tpu.memory_space<vmem>>, vector<17x256xf32>
    %36 = vector.broadcast %23 : vector<1x256xf32> to vector<17x256xf32>
    %37 = arith.mulf %36, %35 : vector<17x256xf32>
    %38 = arith.addf %37, %34 : vector<17x256xf32>
    %c0_22 = arith.constant 0 : index
    %c0_23 = arith.constant 0 : index
    %39 = vector.load %arg13[%c0_22, %c0_23] : memref<17x256xf32, #tpu.memory_space<vmem>>, vector<17x256xf32>
    tpu.vector_store %arg13[%c0_22, %c0_23], %38 {strides = array<i32>} : memref<17x256xf32, #tpu.memory_space<vmem>>, vector<17x256xf32>,
    %c0_24 = arith.constant 0 : index
    %c0_25 = arith.constant 0 : index
    %40 = vector.load %arg12[%c0_24, %c0_25] : memref<1x256xf32, #tpu.memory_space<vmem>>, vector<1x256xf32>
    tpu.vector_store %arg12[%c0_24, %c0_25], %21 {strides = array<i32>} : memref<1x256xf32, #tpu.memory_space<vmem>>, vector<1x256xf32>,
    %c0_i32_26 = arith.constant 0 : i32
    %41 = arith.cmpi eq, %arg2, %c0_i32_26 : i32
    %42 = arith.extui %41 : i1 to i32
    %c0_i32_27 = arith.constant 0 : i32
    %43 = arith.cmpi ne, %42, %c0_i32_27 : i32
    scf.if %43 {
      %c0_28 = arith.constant 0 : index
      %c0_29 = arith.constant 0 : index
      %44 = vector.load %arg13[%c0_28, %c0_29] : memref<17x256xf32, #tpu.memory_space<vmem>>, vector<17x256xf32>
      %45 = vector.extract_strided_slice %44 {offsets = [16, 0], sizes = [1, 256], strides = [1, 1]} : vector<17x256xf32> to vector<1x256xf32>
      %46 = tpu.reciprocal %45 {approx = true} : vector<1x256xf32> -> vector<1x256xf32>
      %c0_30 = arith.constant 0 : index
      %47 = memref.load %arg10[%c0_30] : memref<1xf32, #tpu.memory_space<smem>>
      %48 = vector.extract_strided_slice %44 {offsets = [0, 0], sizes = [16, 256], strides = [1, 1]} : vector<17x256xf32> to vector<16x256xf32>
      %49 = vector.broadcast %46 : vector<1x256xf32> to vector<16x256xf32>
      %50 = arith.mulf %48, %49 : vector<16x256xf32>
      %51 = vector.broadcast %47 : f32 to vector<16x256xf32>
      %52 = arith.mulf %51, %50 : vector<16x256xf32>
      %53 = arith.addf %52, %4 : vector<16x256xf32>
      %c0_31 = arith.constant 0 : index
      %c0_32 = arith.constant 0 : index
      %c0_33 = arith.constant 0 : index
      %54 = vector.load %arg11[%c0_31, %c0_32, %c0_33] : memref<1x16x256xf32, #tpu.memory_space<vmem>>, vector<1x16x256xf32>
      %55 = vector.shape_cast %54 : vector<1x16x256xf32> to vector<16x256xf32>
      %56 = vector.shape_cast %53 : vector<16x256xf32> to vector<1x16x256xf32>
      tpu.vector_store %arg11[%c0_31, %c0_32, %c0_33], %56 {strides = array<i32>} : memref<1x16x256xf32, #tpu.memory_space<vmem>>, vector<1x16x256xf32>,
    } else {
    }
    return
  }
  func.func @transform_0(%arg0: i32, %arg1: i32, %arg2: i32) -> (i32, i32, i32) {
    %c0_i32 = arith.constant 0 : i32
    %c0_i32_0 = arith.constant 0 : i32
    return %arg0, %c0_i32, %arg1 : i32, i32, i32
  }
  func.func @transform_1(%arg0: i32, %arg1: i32, %arg2: i32) -> (i32, i32, i32) {
    %c0_i32 = arith.constant 0 : i32
    %c0_i32_0 = arith.constant 0 : i32
    return %arg0, %c0_i32, %arg2 : i32, i32, i32
  }
  func.func @transform_2(%arg0: i32, %arg1: i32, %arg2: i32) -> (i32, i32) {
    %c0_i32 = arith.constant 0 : i32
    %c0_i32_0 = arith.constant 0 : i32
    %c0_i32_1 = arith.constant 0 : i32
    return %c0_i32, %c0_i32_0 : i32, i32
  }
  func.func @transform_3(%arg0: i32, %arg1: i32, %arg2: i32) -> (i32, i32) {
    %c0_i32 = arith.constant 0 : i32
    %c0_i32_0 = arith.constant 0 : i32
    %c0_i32_1 = arith.constant 0 : i32
    return %c0_i32, %c0_i32_0 : i32, i32
  }
  func.func @transform_4(%arg0: i32, %arg1: i32, %arg2: i32) -> (i32, i32) {
    %c0_i32 = arith.constant 0 : i32
    %c0_i32_0 = arith.constant 0 : i32
    %c0_i32_1 = arith.constant 0 : i32
    return %c0_i32, %c0_i32_0 : i32, i32
  }
  func.func @transform_5(%arg0: i32, %arg1: i32, %arg2: i32) -> (i32, i32) {
    %c0_i32 = arith.constant 0 : i32
    %c0_i32_0 = arith.constant 0 : i32
    %c0_i32_1 = arith.constant 0 : i32
    return %c0_i32, %c0_i32_0 : i32, i32
  }
  func.func @transform_6(%arg0: i32, %arg1: i32, %arg2: i32) -> (i32, i32) {
    %c0_i32 = arith.constant 0 : i32
    %c0_i32_0 = arith.constant 0 : i32
    %c0_i32_1 = arith.constant 0 : i32
    return %c0_i32, %c0_i32_0 : i32, i32
  }
  func.func @transform_7(%arg0: i32, %arg1: i32, %arg2: i32) -> i32 {
    %c0_i32 = arith.constant 0 : i32
    %c0_i32_0 = arith.constant 0 : i32
    return %c0_i32 : i32
  }
  func.func @transform_8(%arg0: i32, %arg1: i32, %arg2: i32) -> (i32, i32, i32) {
    %c0_i32 = arith.constant 0 : i32
    %c0_i32_0 = arith.constant 0 : i32
    return %arg0, %c0_i32, %arg1 : i32, i32, i32
  }
}

</mosaic_0001>

<llo_original>
// kernel: tpu_custom_call.1
$region0: #{tpu_custom_call.1}
  #allocation0 [shape = 'u32[]', space=smem, size = 0x4, offset = 0x4, fixed_abs, tag = 'smem constant byte address 0x4 - core index']
  #allocation1 [shape = 'u32[144,128]{1,0:T(1,128)}', space=vmem, size = 0x12000, scoped, tag = 'internal scratch']
  #allocation2 [shape = 'f32[1,256]{1,0:T(1,128)}', space=vmem, size = 0x400, scoped, tag = 'scratch operand']
  #allocation3 [shape = 'f32[17,256]{1,0:T(8,128)}', space=vmem, size = 0x6000, scoped, tag = 'scratch operand']
  #allocation4 [shape = 'f32[1]{0:T(128)S(6)}', space=smem, size = 0x200, scoped, tag = 'scoped memory for tpu_custom_call.1']
  %s0 = inlined_call_operand.hbm [shape: f32[2,16,256], index: 0, kind: input, shape index: {}]
  %s1 = inlined_call_operand.hbm [shape: f32[2,16,256], index: 1, kind: input, shape index: {}]
  %s2 = inlined_call_operand.vmem [shape: bf16[16,16], index: 2, kind: input, shape index: {}]
  %s3 = inlined_call_operand.vmem [shape: f32[16,1], index: 3, kind: input, shape index: {}]
  %s4 = inlined_call_operand.vmem [shape: bf16[2,16], index: 4, kind: input, shape index: {}]
  %s5 = inlined_call_operand.vmem [shape: bf16[17,16], index: 5, kind: input, shape index: {}]
  %s6 = inlined_call_operand.vmem [shape: f32[17,1], index: 6, kind: input, shape index: {}]
  %s7 = inlined_call_operand.<no memory space> [shape: f32[1], index: 7, kind: input, shape index: {}]
  %s8 = inlined_call_operand.hbm [shape: f32[2,16,256], index: 8, kind: output, shape index: {}]
  %s9 = sld [smem:[#allocation0]]
  $region81: #{tpu_custom_call.1} parent=0
    _
  %s11 = ssub.s32 1, %s9
  %s12 = scalar_select 0, %s11, %s9
  %13 = sst [smem:[#allocation4]] %s7
  $region1: #{tpu_custom_call.1} parent=0
    #allocation5 [shape = 'u8[32768]{0}', space=vmem, size = 0x8000, scoped, tag = 'input window, operand 0']
    #allocation6 [shape = 's32[2]{0}', space=sflag, size = 0x8, scoped, tag = 'scoped memory for tpu_custom_call.1']
    #allocation7 [shape = 's32[2]{0}', space=sflag, size = 0x8, scoped, tag = 'scoped memory for tpu_custom_call.1']
    #allocation8 [shape = 'u8[32768]{0}', space=vmem, size = 0x8000, scoped, tag = 'input window, operand 1']
    #allocation9 [shape = 's32[2]{0}', space=sflag, size = 0x8, scoped, tag = 'scoped memory for tpu_custom_call.1']
    #allocation10 [shape = 'u8[32768]{0}', space=vmem, size = 0x8000, scoped, tag = 'output window, operand 0']
    %14 = vsyncpa [#allocation6], 0
    %s15 = scalar_lea.sflag [#allocation6], 1
    %16 = vsyncpa %s15, 0
    %17 = vsyncpa [#allocation9], 0
    %s18 = scalar_lea.sflag [#allocation9], 1
    %19 = vsyncpa %s18, 0
    %20 = vsyncpa [#allocation7], 0
    %s21 = scalar_lea.sflag [#allocation7], 1
    %22 = vsyncpa %s21, 0
    loop: start=0, step=1, limit=4
    $region2: #{tpu_custom_call.1} parent=1 // loop_pre_header
      _
    $region3: #{tpu_custom_call.1} parent=1 // loop_header
      %s24 = sphi 0, %s28
      %p25 = scmp.ge.s32.totalorder %s24, 4
      %s31 = sphi 0, %s50
      %s32 = sphi 0, %s46
      %s33 = sphi 0, %s42
      %s34 = sphi 0, %s31
      %s35 = sphi 0, %s32
      %s36 = sphi 0, %s33
      %s37 = sphi 0, %s34
      %s38 = sphi 0, %s35
      %s39 = sphi 0, %s36
      %s55 = sphi 0, %s57
      %s58 = sphi 0, %s55
      %s59 = sphi 0, %s58
      %s75 = sphi 0, %s59
      %s83 = sphi 0, %s85
      %s86 = sphi 0, %s83
      %s87 = sphi 0, %s86
      %s103 = sphi 0, %s87
      %s107 = sphi 0, %s107
      %s109 = sphi 0, %s107
      %s110 = sphi 0, %s109
      %s124 = sphi 0, %s110
      %s128 = sphi 0, %s128
      %s130 = sphi 0, %s128
      %s131 = sphi 0, %s130
      %s145 = sphi 0, %s131
      %s149 = sphi 0, %s149
      %s151 = sphi 0, %s149
      %s152 = sphi 0, %s151
      %s166 = sphi 0, %s152
      %s170 = sphi 0, %s170
      %s172 = sphi 0, %s170
      %s173 = sphi 0, %s172
      %s187 = sphi 0, %s173
      %s191 = sphi 0, %s191
      %s193 = sphi 0, %s191
      %s194 = sphi 0, %s193
      %s208 = sphi 0, %s194
      %s212 = sphi 0, %s212
      %s214 = sphi 0, %s212
      %s215 = sphi 0, %s214
      %s229 = sphi 0, %s215
      %s237 = sphi 0, %s239
      %s240 = sphi 0, %s237
      %s241 = sphi 0, %s240
      %s257 = sphi 0, %s241
    $region4: #{tpu_custom_call.1} parent=1 // loop_header_branch
      %27 = sbr.rel (%p25) target = $region8
    $region5: #{tpu_custom_call.1} parent=1 // loop_body
      %s29 = ssub.s32 %s24, 1
      %s30 = ssub.s32 %s24, 2
      %s40 = sadd.s32 1, %s33
      %p41 = scmp.ge.s32.totalorder %s40, 1
      %s42 = scalar_select %p41, 0, %s40
      %s43 = sadd.s32 1, %s32
      %s44 = scalar_select %p41, %s43, %s32
      %p45 = scmp.ge.s32.totalorder %s44, 1
      %s46 = scalar_select %p45, 0, %s44
      %s47 = sadd.s32 1, %s31
      %s48 = scalar_select %p45, %s47, %s31
      %p49 = scmp.ge.s32.totalorder %s48, 2
      %s50 = scalar_select %p49, 0, %s48
      %s51 = ssub.s32 %s31, %s50
      %s52 = ssub.s32 %s32, %s46
      %s53 = sor.u32 %s51, %s52
      %p54 = scmp.eq.s32.totalorder %s53, 0
      %s56 = sadd.s32 %s55, 1
      %s57 = scalar_select %p54, %s55, %s56
      %p60 = pneg %p54
      %p61 = scmp.eq.s32.totalorder %s24, 1
      %p62 = por %p60, %p61
      %p63 = scmp.ne.s32.totalorder %s55, %s58
      %p64 = scmp.eq.s32.totalorder %s24, 0
      %p65 = por %p63, %p64
      %p66 = scmp.ne.s32.totalorder %s55, %s58
      %p67 = scmp.eq.s32.totalorder %s29, 1
      %p68 = por %p66, %p67
      %p69 = scmp.ne.s32.totalorder %s58, %s59
      %p70 = scmp.eq.s32.totalorder %s29, 0
      %p71 = por %p69, %p70
      %p72 = scmp.ne.s32.totalorder %s58, %s59
      %p73 = scmp.eq.s32.totalorder %s30, 1
      %p74 = por %p72, %p73
      %p76 = scmp.ne.s32.totalorder %s59, %s75
      %p77 = scmp.eq.s32.totalorder %s30, 0
      %p78 = por %p76, %p77
      %s79 = ssub.s32 %s31, %s50
      %s80 = ssub.s32 %s33, %s42
      %s81 = sor.u32 %s79, %s80
      %p82 = scmp.eq.s32.totalorder %s81, 0
      %s84 = sadd.s32 %s83, 1
      %s85 = scalar_select %p82, %s83, %s84
      %p88 = pneg %p82
      %p89 = scmp.eq.s32.totalorder %s24, 1
      %p90 = por %p88, %p89
      %p91 = scmp.ne.s32.totalorder %s83, %s86
      %p92 = scmp.eq.s32.totalorder %s24, 0
      %p93 = por %p91, %p92
      %p94 = scmp.ne.s32.totalorder %s83, %s86
      %p95 = scmp.eq.s32.totalorder %s29, 1
      %p96 = por %p94, %p95
      %p97 = scmp.ne.s32.totalorder %s86, %s87
      %p98 = scmp.eq.s32.totalorder %s29, 0
      %p99 = por %p97, %p98
      %p100 = scmp.ne.s32.totalorder %s86, %s87
      %p101 = scmp.eq.s32.totalorder %s30, 1
      %p102 = por %p100, %p101
      %p104 = scmp.ne.s32.totalorder %s87, %s103
      %p105 = scmp.eq.s32.totalorder %s30, 0
      %p106 = por %p104, %p105
      %s108 = sadd.s32 %s107, 1
      %p111 = scmp.eq.s32.totalorder %s24, 1
      %p112 = scmp.ne.s32.totalorder %s107, %s109
      %p113 = scmp.eq.s32.totalorder %s24, 0
      %p114 = por %p112, %p113
      %p115 = scmp.ne.s32.totalorder %s107, %s109
      %p116 = scmp.eq.s32.totalorder %s29, 1
      %p117 = por %p115, %p116
      %p118 = scmp.ne.s32.totalorder %s109, %s110
      %p119 = scmp.eq.s32.totalorder %s29, 0
      %p120 = por %p118, %p119
      %p121 = scmp.ne.s32.totalorder %s109, %s110
      %p122 = scmp.eq.s32.totalorder %s30, 1
      %p123 = por %p121, %p122
      %p125 = scmp.ne.s32.totalorder %s110, %s124
      %p126 = scmp.eq.s32.totalorder %s30, 0
      %p127 = por %p125, %p126
      %s129 = sadd.s32 %s128, 1
      %p132 = scmp.eq.s32.totalorder %s24, 1
      %p133 = scmp.ne.s32.totalorder %s128, %s130
      %p134 = scmp.eq.s32.totalorder %s24, 0
      %p135 = por %p133, %p134
      %p136 = scmp.ne.s32.totalorder %s128, %s130
      %p137 = scmp.eq.s32.totalorder %s29, 1
      %p138 = por %p136, %p137
      %p139 = scmp.ne.s32.totalorder %s130, %s131
      %p140 = scmp.eq.s32.totalorder %s29, 0
      %p141 = por %p139, %p140
      %p142 = scmp.ne.s32.totalorder %s130, %s131
      %p143 = scmp.eq.s32.totalorder %s30, 1
      %p144 = por %p142, %p143
      %p146 = scmp.ne.s32.totalorder %s131, %s145
      %p147 = scmp.eq.s32.totalorder %s30, 0
      %p148 = por %p146, %p147
      %s150 = sadd.s32 %s149, 1
      %p153 = scmp.eq.s32.totalorder %s24, 1
      %p154 = scmp.ne.s32.totalorder %s149, %s151
      %p155 = scmp.eq.s32.totalorder %s24, 0
      %p156 = por %p154, %p155
      %p157 = scmp.ne.s32.totalorder %s149, %s151
      %p158 = scmp.eq.s32.totalorder %s29, 1
      %p159 = por %p157, %p158
      %p160 = scmp.ne.s32.totalorder %s151, %s152
      %p161 = scmp.eq.s32.totalorder %s29, 0
      %p162 = por %p160, %p161
      %p163 = scmp.ne.s32.totalorder %s151, %s152
      %p164 = scmp.eq.s32.totalorder %s30, 1
      %p165 = por %p163, %p164
      %p167 = scmp.ne.s32.totalorder %s152, %s166
      %p168 = scmp.eq.s32.totalorder %s30, 0
      %p169 = por %p167, %p168
      %s171 = sadd.s32 %s170, 1
      %p174 = scmp.eq.s32.totalorder %s24, 1
      %p175 = scmp.ne.s32.totalorder %s170, %s172
      %p176 = scmp.eq.s32.totalorder %s24, 0
      %p177 = por %p175, %p176
      %p178 = scmp.ne.s32.totalorder %s170, %s172
      %p179 = scmp.eq.s32.totalorder %s29, 1
      %p180 = por %p178, %p179
      %p181 = scmp.ne.s32.totalorder %s172, %s173
      %p182 = scmp.eq.s32.totalorder %s29, 0
      %p183 = por %p181, %p182
      %p184 = scmp.ne.s32.totalorder %s172, %s173
      %p185 = scmp.eq.s32.totalorder %s30, 1
      %p186 = por %p184, %p185
      %p188 = scmp.ne.s32.totalorder %s173, %s187
      %p189 = scmp.eq.s32.totalorder %s30, 0
      %p190 = por %p188, %p189
      %s192 = sadd.s32 %s191, 1
      %p195 = scmp.eq.s32.totalorder %s24, 1
      %p196 = scmp.ne.s32.totalorder %s191, %s193
      %p197 = scmp.eq.s32.totalorder %s24, 0
      %p198 = por %p196, %p197
      %p199 = scmp.ne.s32.totalorder %s191, %s193
      %p200 = scmp.eq.s32.totalorder %s29, 1
      %p201 = por %p199, %p200
      %p202 = scmp.ne.s32.totalorder %s193, %s194
      %p203 = scmp.eq.s32.totalorder %s29, 0
      %p204 = por %p202, %p203
      %p205 = scmp.ne.s32.totalorder %s193, %s194
      %p206 = scmp.eq.s32.totalorder %s30, 1
      %p207 = por %p205, %p206
      %p209 = scmp.ne.s32.totalorder %s194, %s208
      %p210 = scmp.eq.s32.totalorder %s30, 0
      %p211 = por %p209, %p210
      %s213 = sadd.s32 %s212, 1
      %p216 = scmp.eq.s32.totalorder %s24, 1
      %p217 = scmp.ne.s32.totalorder %s212, %s214
      %p218 = scmp.eq.s32.totalorder %s24, 0
      %p219 = por %p217, %p218
      %p220 = scmp.ne.s32.totalorder %s212, %s214
      %p221 = scmp.eq.s32.totalorder %s29, 1
      %p222 = por %p220, %p221
      %p223 = scmp.ne.s32.totalorder %s214, %s215
      %p224 = scmp.eq.s32.totalorder %s29, 0
      %p225 = por %p223, %p224
      %p226 = scmp.ne.s32.totalorder %s214, %s215
      %p227 = scmp.eq.s32.totalorder %s30, 1
      %p228 = por %p226, %p227
      %p230 = scmp.ne.s32.totalorder %s215, %s229
      %p231 = scmp.eq.s32.totalorder %s30, 0
      %p232 = por %p230, %p231
      %s233 = ssub.s32 %s31, %s50
      %s234 = ssub.s32 %s32, %s46
      %s235 = sor.u32 %s233, %s234
      %p236 = scmp.eq.s32.totalorder %s235, 0
      %s238 = sadd.s32 %s237, 1
      %s239 = scalar_select %p236, %s237, %s238
      %p242 = pneg %p236
      %p243 = scmp.eq.s32.totalorder %s24, 1
      %p244 = por %p242, %p243
      %p245 = scmp.ne.s32.totalorder %s237, %s240
      %p246 = scmp.eq.s32.totalorder %s24, 0
      %p247 = por %p245, %p246
      %p248 = scmp.ne.s32.totalorder %s237, %s240
      %p249 = scmp.eq.s32.totalorder %s29, 1
      %p250 = por %p248, %p249
      %p251 = scmp.ne.s32.totalorder %s240, %s241
      %p252 = scmp.eq.s32.totalorder %s29, 0
      %p253 = por %p251, %p252
      %p254 = scmp.ne.s32.totalorder %s240, %s241
      %p255 = scmp.eq.s32.totalorder %s30, 1
      %p256 = por %p254, %p255
      %p258 = scmp.ne.s32.totalorder %s241, %s257
      %p259 = scmp.eq.s32.totalorder %s30, 0
      %p260 = por %p258, %p259
      %p261 = scmp.le.s32.totalorder 1, %s24
      %p262 = scmp.lt.s32.totalorder %s24, 3
      %p263 = pnand %p261, %p262
      %p264 = pneg %p263
      // Predicated region
      $region9: #{tpu_custom_call.1} parent=5 // pred_check
        _
      $region10: #{tpu_custom_call.1} parent=5 // pred_check_branch
        %266 = sbr.rel (%p263) target = $region12
      $region11: #{tpu_custom_call.1} parent=5 // pred_region
        %s267 = ssub.s32 %s24, 1
        // Predicated region
        $region13: #{tpu_custom_call.1} parent=11 // pred_check
          %p268 = pneg %p120
        $region14: #{tpu_custom_call.1} parent=11 // pred_check_branch
          %270 = sbr.rel (%p268) target = $region16
        $region15: #{tpu_custom_call.1} parent=11 // pred_region
          _
        $region16: #{tpu_custom_call.1} parent=11 // pred_fallthru
          _
        // Predicated region
        $region17: #{tpu_custom_call.1} parent=11 // pred_check
          %p271 = pneg %p141
        $region18: #{tpu_custom_call.1} parent=11 // pred_check_branch
          %273 = sbr.rel (%p271) target = $region20
        $region19: #{tpu_custom_call.1} parent=11 // pred_region
          _
        $region20: #{tpu_custom_call.1} parent=11 // pred_fallthru
          _
        // Predicated region
        $region21: #{tpu_custom_call.1} parent=11 // pred_check
          %p274 = pneg %p162
        $region22: #{tpu_custom_call.1} parent=11 // pred_check_branch
          %276 = sbr.rel (%p274) target = $region24
        $region23: #{tpu_custom_call.1} parent=11 // pred_region
          _
        $region24: #{tpu_custom_call.1} parent=11 // pred_fallthru
          _
        // Predicated region
        $region25: #{tpu_custom_call.1} parent=11 // pred_check
          %p277 = pneg %p183
        $region26: #{tpu_custom_call.1} parent=11 // pred_check_branch
          %279 = sbr.rel (%p277) target = $region28
        $region27: #{tpu_custom_call.1} parent=11 // pred_region
          _
        $region28: #{tpu_custom_call.1} parent=11 // pred_fallthru
          _
        // Predicated region
        $region29: #{tpu_custom_call.1} parent=11 // pred_check
          %p280 = pneg %p204
        $region30: #{tpu_custom_call.1} parent=11 // pred_check_branch
          %282 = sbr.rel (%p280) target = $region32
        $region31: #{tpu_custom_call.1} parent=11 // pred_region
          _
        $region32: #{tpu_custom_call.1} parent=11 // pred_fallthru
          _
        // Predicated region
        $region33: #{tpu_custom_call.1} parent=11 // pred_check
          %p283 = pneg %p225
        $region34: #{tpu_custom_call.1} parent=11 // pred_check_branch
          %285 = sbr.rel (%p283) target = $region36
        $region35: #{tpu_custom_call.1} parent=11 // pred_region
          _
        $region36: #{tpu_custom_call.1} parent=11 // pred_fallthru
          _
      $region12: #{tpu_custom_call.1} parent=5 // pred_fallthru
        _
      %p286 = scmp.lt.s32.totalorder %s24, 2
      // Predicated region
      $region37: #{tpu_custom_call.1} parent=5 // pred_check
        %p287 = pneg %p286
      $region38: #{tpu_custom_call.1} parent=5 // pred_check_branch
        %289 = sbr.rel (%p287) target = $region40
      $region39: #{tpu_custom_call.1} parent=5 // pred_region
        // Predicated region
        $region41: #{tpu_custom_call.1} parent=39 // pred_check
          %p290 = pneg %p65
        $region42: #{tpu_custom_call.1} parent=39 // pred_check_branch
          %292 = sbr.rel (%p290) target = $region44
        $region43: #{tpu_custom_call.1} parent=39 // pred_region
          %s293 = sand.u32 %s55, 1
          %s294 = scalar_lea.sflag [#allocation6], %s293
          %s295 = sand.u32 %s55, 1
          %s296 = smul.addr %s295, 32
          %s297 = scalar_lea.vmem [#allocation5], %s296
          %s298 = smul.u32 2, %s32
          %s300 = ssub.s32 512, 512
          %301 = vsyncadd %s294, %s300
          %s302 = smul.addr %s31, 4
          %s303 = sadd.s32 %s298, %s302
          %s304 = smul.addr %s303, 128
          %s305 = scalar_lea.hbm %s0, %s304
          %s306 = sshll.u32 %s297, 4
          %s307 = int_to_ptr.vmem [resolvable:$true] %s306
          %312 = dma.hbm_to_vmem [thread:$0]  %s305, 512, %s307, %s294, 256, 256, 16
        $region44: #{tpu_custom_call.1} parent=39 // pred_fallthru
          _
        // Predicated region
        $region45: #{tpu_custom_call.1} parent=39 // pred_check
          %p313 = pneg %p93
        $region46: #{tpu_custom_call.1} parent=39 // pred_check_branch
          %315 = sbr.rel (%p313) target = $region48
        $region47: #{tpu_custom_call.1} parent=39 // pred_region
          %s316 = sand.u32 %s83, 1
          %s317 = scalar_lea.sflag [#allocation9], %s316
          %s318 = sand.u32 %s83, 1
          %s319 = smul.addr %s318, 32
          %s320 = scalar_lea.vmem [#allocation8], %s319
          %s321 = smul.u32 2, %s33
          %s323 = ssub.s32 512, 512
          %324 = vsyncadd %s317, %s323
          %s325 = smul.addr %s31, 4
          %s326 = sadd.s32 %s321, %s325
          %s327 = smul.addr %s326, 128
          %s328 = scalar_lea.hbm %s1, %s327
          %s329 = sshll.u32 %s320, 4
          %s330 = int_to_ptr.vmem [resolvable:$true] %s329
          %335 = dma.hbm_to_vmem [thread:$0]  %s328, 512, %s330, %s317, 256, 256, 16
        $region48: #{tpu_custom_call.1} parent=39 // pred_fallthru
          _
      $region40: #{tpu_custom_call.1} parent=5 // pred_fallthru
        _
      %p336 = scmp.le.s32.totalorder 1, %s24
      %p337 = scmp.lt.s32.totalorder %s24, 3
      %p338 = pnand %p336, %p337
      %p339 = pneg %p338
      // Predicated region
      $region49: #{tpu_custom_call.1} parent=5 // pred_check
        _
      $region50: #{tpu_custom_call.1} parent=5 // pred_check_branch
        %341 = sbr.rel (%p338) target = $region52
      $region51: #{tpu_custom_call.1} parent=5 // pred_region
        %s342 = ssub.s32 %s24, 1
        %s343 = sand.u32 %s58, 1
        %s344 = scalar_lea.sflag [#allocation6], %s343
        %s345 = sand.u32 %s58, 1
        %s346 = smul.addr %s345, 32
        %s347 = scalar_lea.vmem [#allocation5], %s346
        // Predicated region
        $region53: #{tpu_custom_call.1} parent=51 // pred_check
          %p348 = pneg %p71
        $region54: #{tpu_custom_call.1} parent=51 // pred_check_branch
          %350 = sbr.rel (%p348) target = $region56
        $region55: #{tpu_custom_call.1} parent=51 // pred_region
          %351 = dma.done %s344, 512
        $region56: #{tpu_custom_call.1} parent=51 // pred_fallthru
          _
        %s352 = sand.u32 %s86, 1
        %s353 = scalar_lea.sflag [#allocation9], %s352
        %s354 = sand.u32 %s86, 1
        %s355 = smul.addr %s354, 32
        %s356 = scalar_lea.vmem [#allocation8], %s355
        // Predicated region
        $region57: #{tpu_custom_call.1} parent=51 // pred_check
          %p357 = pneg %p99
        $region58: #{tpu_custom_call.1} parent=51 // pred_check_branch
          %359 = sbr.rel (%p357) target = $region60
        $region59: #{tpu_custom_call.1} parent=51 // pred_region
          %360 = dma.done %s353, 512
        $region60: #{tpu_custom_call.1} parent=51 // pred_fallthru
          _
        %s361 = sand.u32 %s58, 1
        %s362 = scalar_lea.sflag [#allocation6], %s361
        %s363 = sand.u32 %s58, 1
        %s364 = smul.addr %s363, 32
        %s365 = scalar_lea.vmem [#allocation5], %s364
        %p366 = pneg %p71
        %p367 = pneg %p68
        %s368 = sand.u32 %s86, 1
        %s369 = scalar_lea.sflag [#allocation9], %s368
        %s370 = sand.u32 %s86, 1
        %s371 = smul.addr %s370, 32
        %s372 = scalar_lea.vmem [#allocation8], %s371
        %p373 = pneg %p99
        %p374 = pneg %p96
        %p375 = pneg %p120
        %p376 = pneg %p117
        %p377 = pneg %p141
        %p378 = pneg %p138
        %p379 = pneg %p162
        %p380 = pneg %p159
        %p381 = pneg %p183
        %p382 = pneg %p180
        %p383 = pneg %p204
        %p384 = pneg %p201
        %p385 = pneg %p225
        %p386 = pneg %p222
        %p387 = pneg %p253
        %p388 = pneg %p250
        %s389 = sand.u32 %s240, 1
        %s390 = scalar_lea.sflag [#allocation7], %s389
        %s391 = sand.u32 %s240, 1
        %s392 = smul.addr %s391, 32
        %s393 = scalar_lea.vmem [#allocation10], %s392
        %s394 = smul.u32 2, %s35
        %s395 = smul.u32 2, %s36
        %s396 = smul.u32 2, %s35
        %p398 = scmp.eq.s32.totalorder %s36, 0
        // Predicated region
        $region61: #{tpu_custom_call.1} parent=51 // pred_check
          %p399 = pneg %p398
        $region62: #{tpu_custom_call.1} parent=51 // pred_check_branch
          %401 = sbr.rel (%p399) target = $region64
        $region63: #{tpu_custom_call.1} parent=51 // pred_region
          %v402 = vlaneseq
          %vm403 = vcmp.ge.s32.totalorder %v402, 0
          %vm404 = vcmp.lt.s32.totalorder %v402, 256
          %vm405 = vmand %vm403, %vm404
          %406 = vst.msk [vmem:[#allocation2] sm:$0x3] %vm405, -inf
          %407 = vst [vmem:[#allocation3] sm:$0xff] 0.0
          %408 = vst [vmem:[#allocation3 + $0x8] sm:$0xff] 0.0
          %409 = vst [vmem:[#allocation3 + $0x10] sm:$0xff] 0.0
          %410 = vst [vmem:[#allocation3 + $0x18] sm:$0xff] 0.0
          %411 = vst [vmem:[#allocation3 + $0x20] sm:$0x1] 0.0
          %412 = vst [vmem:[#allocation3 + $0x28] sm:$0x1] 0.0
        $region64: #{tpu_custom_call.1} parent=51 // pred_fallthru
          _
        %v413 = vld [vmem:[%s347] sm:$0xff]
        %v414 = vld [vmem:[%s347 + $0x8] sm:$0xff]
        %v415 = vld [vmem:[%s347 + $0x10] sm:$0xff]
        %v416 = vld [vmem:[%s347 + $0x18] sm:$0xff]
        %v417 = vld [vmem:[%s356] sm:$0xff]
        %v418 = vld [vmem:[%s356 + $0x8] sm:$0xff]
        %v419 = vld [vmem:[%s356 + $0x10] sm:$0xff]
        %v420 = vld [vmem:[%s356 + $0x18] sm:$0xff]
        %v421 = vpack.c.bf16 %v415, %v413
        %v422 = vpack.c.bf16 %v416, %v414
        %v423 = vpack.c.bf16 %v419, %v417
        %v424 = vpack.c.bf16 %v420, %v418
        %v425 = vld [vmem:[%s2] sm:$0xf]
        %v426 = vld [vmem:[%s2 + $0x4] sm:$0xf]
        %v427 = vld [vmem:[%s3] sm:$0xff]
        %v428 = vld [vmem:[%s3 + $0x8] sm:$0xff]
        %430 = vset.pattern.permute.xlu0 0
        %431 = vperm.xlu0 %430, %v427
        %v432 = vpop.permute.xlu0 %431
        %435 = vset.pattern.permute.xlu0 0
        %436 = vperm.xlu0 %435, %v428
        %v437 = vpop.permute.xlu0 %436
        %v441 = vunpack.c.l.b16 %v425
        %v442 = vunpack.c.l.b16 %v426
        %v443 = vpack.c.b16 %v442, %v441
        %vm444 = vcmask 130048
        %v446 = vsel %vm444, %v443, 0
        %448 = vmatprep.subr.bf16.mxu0 %v422
        %449 = vmatpush1.bf16.msra.mxu0 %v421
        %450 = vmatprep.subr.bf16.mxu0 0
        %451 = vmatpush1.bf16.msra.mxu0 0
        %452 = vmatprep.subr.bf16.mxu0 0
        %453 = vmatpush1.bf16.msra.mxu0 0
        %454 = vmatprep.subr.bf16.mxu0 0
        %455 = vmatpush1.bf16.msra.mxu0 0
        %456 = vmatprep.subr.bf16.mxu0 0
        %457 = vmatpush1.bf16.msra.mxu0 0
        %458 = vmatprep.subr.bf16.mxu0 0
        %459 = vmatpush1.bf16.msra.mxu0 0
        %460 = vmatprep.subr.bf16.mxu0 0
        %461 = vmatpush1.bf16.msra.mxu0 0
        %462 = vmatprep.subr.bf16.mxu0 0
        %463 = vmatpush1.bf16.msra.mxu0 0
        %464 = vmatprep.subr.bf16.mxu0 0
        %465 = vmatpush1.bf16.msra.mxu0 0
        %466 = vmatprep.subr.bf16.mxu0 0
        %467 = vmatpush1.bf16.msra.mxu0 0
        %468 = vmatprep.subr.bf16.mxu0 0
        %469 = vmatpush1.bf16.msra.mxu0 0
        %470 = vmatprep.subr.bf16.mxu0 0
        %471 = vmatpush1.bf16.msra.mxu0 0
        %472 = vmatprep.subr.bf16.mxu0 0
        %473 = vmatpush1.bf16.msra.mxu0 0
        %474 = vmatprep.subr.bf16.mxu0 0
        %475 = vmatpush1.bf16.msra.mxu0 0
        %476 = vmatprep.subr.bf16.mxu0 0
        %477 = vmatpush1.bf16.msra.mxu0 0
        %478 = vmatprep.subr.bf16.mxu0 0
        %479 = vmatpush1.bf16.msra.mxu0 0
        %480 = vmatprep.mubr.bf16.mxu0 0
        %481 = vmatmul.mubr.bf16.gmra.mrb[0].mxu0 %v446
        %v482 = vpop.f32.mrb[0].mxu0
        %v483 = vadd.f32 %v432, %v482
        %v484 = vpop.f32.mrb[0].mxu0
        %v485 = vadd.f32 %v432, %v484
        %v486 = vpop.f32.mrb[0].mxu0
        %v487 = vadd.f32 %v437, %v486
        %v488 = vpop.f32.mrb[0].mxu0
        %v489 = vadd.f32 %v437, %v488
        %490 = vdwg.mxu0
        %491 = vxpose.xlu0.b32.start [1/16] %v417, 128
        %492 = vxpose.xlu0.b32.cont [2/16] %v419, 128
        %493 = vxpose.xlu0.b32.cont [3/16] 0.0, 128
        %494 = vxpose.xlu0.b32.cont [4/16] 0.0, 128
        %495 = vxpose.xlu0.b32.cont [5/16] 0.0, 128
        %496 = vxpose.xlu0.b32.cont [6/16] 0.0, 128
        %497 = vxpose.xlu0.b32.cont [7/16] 0.0, 128
        %498 = vxpose.xlu0.b32.cont [8/16] 0.0, 128
        %499 = vxpose.xlu0.b32.cont [9/16] 0.0, 128
        %500 = vxpose.xlu0.b32.cont [10/16] 0.0, 128
        %501 = vxpose.xlu0.b32.cont [11/16] 0.0, 128
        %502 = vxpose.xlu0.b32.cont [12/16] 0.0, 128
        %503 = vxpose.xlu0.b32.cont [13/16] 0.0, 128
        %504 = vxpose.xlu0.b32.cont [14/16] 0.0, 128
        %505 = vxpose.xlu0.b32.cont [15/16] 0.0, 128
        %506 = vxpose.xlu0.b32.end [16/16] 0.0, 128
        %v507 = vpop.trf.xlu0
        %v508 = vpop.trf.xlu0
        %v509 = vpop.trf.xlu0
        %v510 = vpop.trf.xlu0
        %v511 = vpop.trf.xlu0
        %v512 = vpop.trf.xlu0
        %v513 = vpop.trf.xlu0
        %v514 = vpop.trf.xlu0
        %v515 = vpop.trf.xlu0
        %v516 = vpop.trf.xlu0
        %v517 = vpop.trf.xlu0
        %v518 = vpop.trf.xlu0
        %v519 = vpop.trf.xlu0
        %v520 = vpop.trf.xlu0
        %v521 = vpop.trf.xlu0
        %v522 = vpop.trf.xlu0
        %523 = vxpose.xlu0.b32.start [1/16] %v418, 128
        %524 = vxpose.xlu0.b32.cont [2/16] %v420, 128
        %525 = vxpose.xlu0.b32.cont [3/16] 0.0, 128
        %526 = vxpose.xlu0.b32.cont [4/16] 0.0, 128
        %527 = vxpose.xlu0.b32.cont [5/16] 0.0, 128
        %528 = vxpose.xlu0.b32.cont [6/16] 0.0, 128
        %529 = vxpose.xlu0.b32.cont [7/16] 0.0, 128
        %530 = vxpose.xlu0.b32.cont [8/16] 0.0, 128
        %531 = vxpose.xlu0.b32.cont [9/16] 0.0, 128
        %532 = vxpose.xlu0.b32.cont [10/16] 0.0, 128
        %533 = vxpose.xlu0.b32.cont [11/16] 0.0, 128
        %534 = vxpose.xlu0.b32.cont [12/16] 0.0, 128
        %535 = vxpose.xlu0.b32.cont [13/16] 0.0, 128
        %536 = vxpose.xlu0.b32.cont [14/16] 0.0, 128
        %537 = vxpose.xlu0.b32.cont [15/16] 0.0, 128
        %538 = vxpose.xlu0.b32.end [16/16] 0.0, 128
        %v539 = vpop.trf.xlu0
        %v540 = vpop.trf.xlu0
        %v541 = vpop.trf.xlu0
        %v542 = vpop.trf.xlu0
        %v543 = vpop.trf.xlu0
        %v544 = vpop.trf.xlu0
        %v545 = vpop.trf.xlu0
        %v546 = vpop.trf.xlu0
        %v547 = vpop.trf.xlu0
        %v548 = vpop.trf.xlu0
        %v549 = vpop.trf.xlu0
        %v550 = vpop.trf.xlu0
        %v551 = vpop.trf.xlu0
        %v552 = vpop.trf.xlu0
        %v553 = vpop.trf.xlu0
        %v554 = vpop.trf.xlu0
        %v555 = vpack.c.bf16 %v508, %v507
        %v556 = vpack.c.bf16 %v510, %v509
        %v557 = vpack.c.bf16 %v512, %v511
        %v558 = vpack.c.bf16 %v514, %v513
        %v559 = vpack.c.bf16 %v516, %v515
        %v560 = vpack.c.bf16 %v518, %v517
        %v561 = vpack.c.bf16 %v520, %v519
        %v562 = vpack.c.bf16 %v522, %v521
        %v563 = vpack.c.bf16 %v540, %v539
        %v564 = vpack.c.bf16 %v542, %v541
        %v565 = vpack.c.bf16 %v544, %v543
        %v566 = vpack.c.bf16 %v546, %v545
        %v567 = vpack.c.bf16 %v548, %v547
        %v568 = vpack.c.bf16 %v550, %v549
        %v569 = vpack.c.bf16 %v552, %v551
        %v570 = vpack.c.bf16 %v554, %v553
        %v571 = vpack.c.bf16 %v487, %v483
        %v572 = vpack.c.bf16 %v489, %v485
        %v574 = vsel %vm444, %v555, 0
        %v577 = vsel %vm444, %v556, 0
        %v580 = vsel %vm444, %v557, 0
        %v583 = vsel %vm444, %v558, 0
        %v586 = vsel %vm444, %v559, 0
        %v589 = vsel %vm444, %v560, 0
        %v592 = vsel %vm444, %v561, 0
        %v595 = vsel %vm444, %v562, 0
        %v598 = vsel %vm444, %v563, 0
        %v601 = vsel %vm444, %v564, 0
        %v604 = vsel %vm444, %v565, 0
        %v607 = vsel %vm444, %v566, 0
        %v610 = vsel %vm444, %v567, 0
        %v613 = vsel %vm444, %v568, 0
        %v616 = vsel %vm444, %v569, 0
        %v619 = vsel %vm444, %v570, 0
        %621 = vmatprep.subr.bf16.mxu0 %v572
        %622 = vmatpush1.bf16.msra.mxu0 %v571
        %623 = vmatprep.subr.bf16.mxu0 0
        %624 = vmatpush1.bf16.msra.mxu0 0
        %625 = vmatprep.subr.bf16.mxu0 0
        %626 = vmatpush1.bf16.msra.mxu0 0
        %627 = vmatprep.subr.bf16.mxu0 0
        %628 = vmatpush1.bf16.msra.mxu0 0
        %629 = vmatprep.subr.bf16.mxu0 0
        %630 = vmatpush1.bf16.msra.mxu0 0
        %631 = vmatprep.subr.bf16.mxu0 0
        %632 = vmatpush1.bf16.msra.mxu0 0
        %633 = vmatprep.subr.bf16.mxu0 0
        %634 = vmatpush1.bf16.msra.mxu0 0
        %635 = vmatprep.subr.bf16.mxu0 0
        %636 = vmatpush1.bf16.msra.mxu0 0
        %637 = vmatprep.subr.bf16.mxu0 0
        %638 = vmatpush1.bf16.msra.mxu0 0
        %639 = vmatprep.subr.bf16.mxu0 0
        %640 = vmatpush1.bf16.msra.mxu0 0
        %641 = vmatprep.subr.bf16.mxu0 0
        %642 = vmatpush1.bf16.msra.mxu0 0
        %643 = vmatprep.subr.bf16.mxu0 0
        %644 = vmatpush1.bf16.msra.mxu0 0
        %645 = vmatprep.subr.bf16.mxu0 0
        %646 = vmatpush1.bf16.msra.mxu0 0
        %647 = vmatprep.subr.bf16.mxu0 0
        %648 = vmatpush1.bf16.msra.mxu0 0
        %649 = vmatprep.subr.bf16.mxu0 0
        %650 = vmatpush1.bf16.msra.mxu0 0
        %651 = vmatprep.subr.bf16.mxu0 0
        %652 = vmatpush1.bf16.msra.mxu0 0
        %653 = vmatprep.mubr.bf16.mxu0 0
        %654 = vmatmul.mubr.bf16.gmra.mrb[0].mxu0 %v574
        %v655 = vpop.f32.mrb[0].mxu0
        %v656 = vadd.f32 0.0, %v655
        %v657 = vpop.f32.mrb[0].mxu0
        %v658 = vadd.f32 0.0, %v657
        %v659 = vpop.f32.mrb[0].mxu0
        %v660 = vadd.f32 0.0, %v659
        %v661 = vpop.f32.mrb[0].mxu0
        %v662 = vadd.f32 0.0, %v661
        %663 = vmatprep.mubr.bf16.mxu0 0
        %664 = vmatmul.mubr.bf16.gmra.mrb[0].mxu0 %v577
        %v665 = vpop.f32.mrb[0].mxu0
        %v666 = vadd.f32 0.0, %v665
        %v667 = vpop.f32.mrb[0].mxu0
        %v668 = vadd.f32 0.0, %v667
        %v669 = vpop.f32.mrb[0].mxu0
        %v670 = vadd.f32 0.0, %v669
        %v671 = vpop.f32.mrb[0].mxu0
        %v672 = vadd.f32 0.0, %v671
        %673 = vmatprep.mubr.bf16.mxu0 0
        %674 = vmatmul.mubr.bf16.gmra.mrb[0].mxu0 %v580
        %v675 = vpop.f32.mrb[0].mxu0
        %v676 = vadd.f32 0.0, %v675
        %v677 = vpop.f32.mrb[0].mxu0
        %v678 = vadd.f32 0.0, %v677
        %v679 = vpop.f32.mrb[0].mxu0
        %v680 = vadd.f32 0.0, %v679
        %v681 = vpop.f32.mrb[0].mxu0
        %v682 = vadd.f32 0.0, %v681
        %683 = vmatprep.mubr.bf16.mxu0 0
        %684 = vmatmul.mubr.bf16.gmra.mrb[0].mxu0 %v583
        %v685 = vpop.f32.mrb[0].mxu0
        %v686 = vadd.f32 0.0, %v685
        %v687 = vpop.f32.mrb[0].mxu0
        %v688 = vadd.f32 0.0, %v687
        %v689 = vpop.f32.mrb[0].mxu0
        %v690 = vadd.f32 0.0, %v689
        %v691 = vpop.f32.mrb[0].mxu0
        %v692 = vadd.f32 0.0, %v691
        %693 = vmatprep.mubr.bf16.mxu0 0
        %694 = vmatmul.mubr.bf16.gmra.mrb[0].mxu0 %v586
        %v695 = vpop.f32.mrb[0].mxu0
        %v696 = vadd.f32 0.0, %v695
        %v697 = vpop.f32.mrb[0].mxu0
        %v698 = vadd.f32 0.0, %v697
        %v699 = vpop.f32.mrb[0].mxu0
        %v700 = vadd.f32 0.0, %v699
        %v701 = vpop.f32.mrb[0].mxu0
        %v702 = vadd.f32 0.0, %v701
        %703 = vmatprep.mubr.bf16.mxu0 0
        %704 = vmatmul.mubr.bf16.gmra.mrb[0].mxu0 %v589
        %v705 = vpop.f32.mrb[0].mxu0
        %v706 = vadd.f32 0.0, %v705
        %v707 = vpop.f32.mrb[0].mxu0
        %v708 = vadd.f32 0.0, %v707
        %v709 = vpop.f32.mrb[0].mxu0
        %v710 = vadd.f32 0.0, %v709
        %v711 = vpop.f32.mrb[0].mxu0
        %v712 = vadd.f32 0.0, %v711
        %713 = vmatprep.mubr.bf16.mxu0 0
        %714 = vmatmul.mubr.bf16.gmra.mrb[0].mxu0 %v592
        %v715 = vpop.f32.mrb[0].mxu0
        %v716 = vadd.f32 0.0, %v715
        %v717 = vpop.f32.mrb[0].mxu0
        %v718 = vadd.f32 0.0, %v717
        %v719 = vpop.f32.mrb[0].mxu0
        %v720 = vadd.f32 0.0, %v719
        %v721 = vpop.f32.mrb[0].mxu0
        %v722 = vadd.f32 0.0, %v721
        %723 = vmatprep.mubr.bf16.mxu0 0
        %724 = vmatmul.mubr.bf16.gmra.mrb[0].mxu0 %v595
        %v725 = vpop.f32.mrb[0].mxu0
        %v726 = vadd.f32 0.0, %v725
        %v727 = vpop.f32.mrb[0].mxu0
        %v728 = vadd.f32 0.0, %v727
        %v729 = vpop.f32.mrb[0].mxu0
        %v730 = vadd.f32 0.0, %v729
        %v731 = vpop.f32.mrb[0].mxu0
        %v732 = vadd.f32 0.0, %v731
        %733 = vmatprep.mubr.bf16.mxu0 0
        %734 = vmatmul.mubr.bf16.gmra.mrb[0].mxu0 %v598
        %v735 = vpop.f32.mrb[0].mxu0
        %v736 = vadd.f32 0.0, %v735
        %v737 = vpop.f32.mrb[0].mxu0
        %v738 = vadd.f32 0.0, %v737
        %v739 = vpop.f32.mrb[0].mxu0
        %v740 = vadd.f32 0.0, %v739
        %v741 = vpop.f32.mrb[0].mxu0
        %v742 = vadd.f32 0.0, %v741
        %743 = vmatprep.mubr.bf16.mxu0 0
        %744 = vmatmul.mubr.bf16.gmra.mrb[0].mxu0 %v601
        %v745 = vpop.f32.mrb[0].mxu0
        %v746 = vadd.f32 0.0, %v745
        %v747 = vpop.f32.mrb[0].mxu0
        %v748 = vadd.f32 0.0, %v747
        %v749 = vpop.f32.mrb[0].mxu0
        %v750 = vadd.f32 0.0, %v749
        %v751 = vpop.f32.mrb[0].mxu0
        %v752 = vadd.f32 0.0, %v751
        %753 = vmatprep.mubr.bf16.mxu0 0
        %754 = vmatmul.mubr.bf16.gmra.mrb[0].mxu0 %v604
        %v755 = vpop.f32.mrb[0].mxu0
        %v756 = vadd.f32 0.0, %v755
        %v757 = vpop.f32.mrb[0].mxu0
        %v758 = vadd.f32 0.0, %v757
        %v759 = vpop.f32.mrb[0].mxu0
        %v760 = vadd.f32 0.0, %v759
        %v761 = vpop.f32.mrb[0].mxu0
        %v762 = vadd.f32 0.0, %v761
        %763 = vmatprep.mubr.bf16.mxu0 0
        %764 = vmatmul.mubr.bf16.gmra.mrb[0].mxu0 %v607
        %v765 = vpop.f32.mrb[0].mxu0
        %v766 = vadd.f32 0.0, %v765
        %v767 = vpop.f32.mrb[0].mxu0
        %v768 = vadd.f32 0.0, %v767
        %v769 = vpop.f32.mrb[0].mxu0
        %v770 = vadd.f32 0.0, %v769
        %v771 = vpop.f32.mrb[0].mxu0
        %v772 = vadd.f32 0.0, %v771
        %773 = vmatprep.mubr.bf16.mxu0 0
        %774 = vmatmul.mubr.bf16.gmra.mrb[0].mxu0 %v610
        %v775 = vpop.f32.mrb[0].mxu0
        %v776 = vadd.f32 0.0, %v775
        %v777 = vpop.f32.mrb[0].mxu0
        %v778 = vadd.f32 0.0, %v777
        %v779 = vpop.f32.mrb[0].mxu0
        %v780 = vadd.f32 0.0, %v779
        %v781 = vpop.f32.mrb[0].mxu0
        %v782 = vadd.f32 0.0, %v781
        %783 = vmatprep.mubr.bf16.mxu0 0
        %784 = vmatmul.mubr.bf16.gmra.mrb[0].mxu0 %v613
        %v785 = vpop.f32.mrb[0].mxu0
        %v786 = vadd.f32 0.0, %v785
        %v787 = vpop.f32.mrb[0].mxu0
        %v788 = vadd.f32 0.0, %v787
        %v789 = vpop.f32.mrb[0].mxu0
        %v790 = vadd.f32 0.0, %v789
        %v791 = vpop.f32.mrb[0].mxu0
        %v792 = vadd.f32 0.0, %v791
        %793 = vmatprep.mubr.bf16.mxu0 0
        %794 = vmatmul.mubr.bf16.gmra.mrb[0].mxu0 %v616
        %v795 = vpop.f32.mrb[0].mxu0
        %v796 = vadd.f32 0.0, %v795
        %v797 = vpop.f32.mrb[0].mxu0
        %v798 = vadd.f32 0.0, %v797
        %v799 = vpop.f32.mrb[0].mxu0
        %v800 = vadd.f32 0.0, %v799
        %v801 = vpop.f32.mrb[0].mxu0
        %v802 = vadd.f32 0.0, %v801
        %803 = vmatprep.mubr.bf16.mxu0 0
        %804 = vmatmul.mubr.bf16.gmra.mrb[0].mxu0 %v619
        %v805 = vpop.f32.mrb[0].mxu0
        %v806 = vadd.f32 0.0, %v805
        %v807 = vpop.f32.mrb[0].mxu0
        %v808 = vadd.f32 0.0, %v807
        %v809 = vpop.f32.mrb[0].mxu0
        %v810 = vadd.f32 0.0, %v809
        %v811 = vpop.f32.mrb[0].mxu0
        %v812 = vadd.f32 0.0, %v811
        %813 = vdwg.mxu0
        %v814 = vld [vmem:[#allocation2] sm:$0x3]
        %v815 = vmax.f32 %v656, %v666
        %v816 = vmax.f32 %v660, %v670
        %v817 = vmax.f32 %v815, %v676
        %v818 = vmax.f32 %v816, %v680
        %v819 = vmax.f32 %v817, %v686
        %v820 = vmax.f32 %v818, %v690
        %v821 = vmax.f32 %v819, %v696
        %v822 = vmax.f32 %v820, %v700
        %v823 = vmax.f32 %v821, %v706
        %v824 = vmax.f32 %v822, %v710
        %v825 = vmax.f32 %v823, %v716
        %v826 = vmax.f32 %v824, %v720
        %v827 = vmax.f32 %v825, %v726
        %v828 = vmax.f32 %v826, %v730
        %v829 = vmax.f32 %v827, %v736
        %v830 = vmax.f32 %v828, %v740
        %v831 = vmax.f32 %v829, %v746
        %v832 = vmax.f32 %v830, %v750
        %v833 = vmax.f32 %v831, %v756
        %v834 = vmax.f32 %v832, %v760
        %v835 = vmax.f32 %v833, %v766
        %v836 = vmax.f32 %v834, %v770
        %v837 = vmax.f32 %v835, %v776
        %v838 = vmax.f32 %v836, %v780
        %v839 = vmax.f32 %v837, %v786
        %v840 = vmax.f32 %v838, %v790
        %v841 = vmax.f32 %v839, %v796
        %v842 = vmax.f32 %v840, %v800
        %v843 = vmax.f32 %v841, %v806
        %v844 = vmax.f32 %v842, %v810
        %v845 = vmax.f32 %v843, %v844
        %v846 = vrot.slane %v845, 4
        %v847 = vmax.f32 %v845, %v846
        %v848 = vrot.slane %v847, 2
        %v849 = vmax.f32 %v847, %v848
        %v850 = vrot.slane %v849, 1
        %v851 = vmax.f32 %v849, %v850
        %v852 = vmax.f32 %v658, %v668
        %v853 = vmax.f32 %v662, %v672
        %v854 = vmax.f32 %v852, %v678
        %v855 = vmax.f32 %v853, %v682
        %v856 = vmax.f32 %v854, %v688
        %v857 = vmax.f32 %v855, %v692
        %v858 = vmax.f32 %v856, %v698
        %v859 = vmax.f32 %v857, %v702
        %v860 = vmax.f32 %v858, %v708
        %v861 = vmax.f32 %v859, %v712
        %v862 = vmax.f32 %v860, %v718
        %v863 = vmax.f32 %v861, %v722
        %v864 = vmax.f32 %v862, %v728
        %v865 = vmax.f32 %v863, %v732
        %v866 = vmax.f32 %v864, %v738
        %v867 = vmax.f32 %v865, %v742
        %v868 = vmax.f32 %v866, %v748
        %v869 = vmax.f32 %v867, %v752
        %v870 = vmax.f32 %v868, %v758
        %v871 = vmax.f32 %v869, %v762
        %v872 = vmax.f32 %v870, %v768
        %v873 = vmax.f32 %v871, %v772
        %v874 = vmax.f32 %v872, %v778
        %v875 = vmax.f32 %v873, %v782
        %v876 = vmax.f32 %v874, %v788
        %v877 = vmax.f32 %v875, %v792
        %v878 = vmax.f32 %v876, %v798
        %v879 = vmax.f32 %v877, %v802
        %v880 = vmax.f32 %v878, %v808
        %v881 = vmax.f32 %v879, %v812
        %v882 = vmax.f32 %v880, %v881
        %v883 = vrot.slane %v882, 4
        %v884 = vmax.f32 %v882, %v883
        %v885 = vrot.slane %v884, 2
        %v886 = vmax.f32 %v884, %v885
        %v887 = vrot.slane %v886, 1
        %v888 = vmax.f32 %v886, %v887
        %v891 = vcombine.low %v851, %v888
        %v893 = vunpack.c.l.s4 1966171168
        %v894 = vunpack.c.0.s8 %v893
        %v895 = vlaneseq
        %v896 = vshrl.u32 %v895, 7
        %v897 = vsub.s32 %v894, %v896
        %v898 = vrot.slane %v891, %v897
        %v900 = vunpack.c.l.s4 1966171168
        %v901 = vunpack.c.0.s8 %v900
        %v902 = vlaneseq
        %v903 = vshrl.u32 %v902, 7
        %v904 = vsub.s32 %v901, %v903
        %v905 = vrot.slane %v898, %v904
        %v907 = vmax.f32 %v814, %v905
        %v908 = vsub.f32 %v814, %v907
        %v909 = vmul.f32 %v908, 1.442695
        %v910 = vpow.pop %v909
        %v912 = vlaneseq
        %v913 = vshrl.u32 %v912, 7
        %v914 = vsub.s32 0, %v913
        %v915 = vrot.slane %v907, %v914
        %v916 = vlaneseq
        %v917 = vshrl.u32 %v916, 7
        %v918 = vsub.s32 1, %v917
        %v919 = vrot.slane %v907, %v918
        %v922 = vsub.f32 %v656, %v915
        %v923 = vsub.f32 %v658, %v919
        %v924 = vsub.f32 %v660, %v915
        %v925 = vsub.f32 %v662, %v919
        %v926 = vsub.f32 %v666, %v915
        %v927 = vsub.f32 %v668, %v919
        %v928 = vsub.f32 %v670, %v915
        %v929 = vsub.f32 %v672, %v919
        %v930 = vsub.f32 %v676, %v915
        %v931 = vsub.f32 %v678, %v919
        %v932 = vsub.f32 %v680, %v915
        %v933 = vsub.f32 %v682, %v919
        %v934 = vsub.f32 %v686, %v915
        %v935 = vsub.f32 %v688, %v919
        %v936 = vsub.f32 %v690, %v915
        %v937 = vsub.f32 %v692, %v919
        %v938 = vsub.f32 %v696, %v915
        %v939 = vsub.f32 %v698, %v919
        %v940 = vsub.f32 %v700, %v915
        %v941 = vsub.f32 %v702, %v919
        %v942 = vsub.f32 %v706, %v915
        %v943 = vsub.f32 %v708, %v919
        %v944 = vsub.f32 %v710, %v915
        %v945 = vsub.f32 %v712, %v919
        %v946 = vsub.f32 %v716, %v915
        %v947 = vsub.f32 %v718, %v919
        %v948 = vsub.f32 %v720, %v915
        %v949 = vsub.f32 %v722, %v919
        %v950 = vsub.f32 %v726, %v915
        %v951 = vsub.f32 %v728, %v919
        %v952 = vsub.f32 %v730, %v915
        %v953 = vsub.f32 %v732, %v919
        %v954 = vsub.f32 %v736, %v915
        %v955 = vsub.f32 %v738, %v919
        %v956 = vsub.f32 %v740, %v915
        %v957 = vsub.f32 %v742, %v919
        %v958 = vsub.f32 %v746, %v915
        %v959 = vsub.f32 %v748, %v919
        %v960 = vsub.f32 %v750, %v915
        %v961 = vsub.f32 %v752, %v919
        %v962 = vsub.f32 %v756, %v915
        %v963 = vsub.f32 %v758, %v919
        %v964 = vsub.f32 %v760, %v915
        %v965 = vsub.f32 %v762, %v919
        %v966 = vsub.f32 %v766, %v915
        %v967 = vsub.f32 %v768, %v919
        %v968 = vsub.f32 %v770, %v915
        %v969 = vsub.f32 %v772, %v919
        %v970 = vsub.f32 %v776, %v915
        %v971 = vsub.f32 %v778, %v919
        %v972 = vsub.f32 %v780, %v915
        %v973 = vsub.f32 %v782, %v919
        %v974 = vsub.f32 %v786, %v915
        %v975 = vsub.f32 %v788, %v919
        %v976 = vsub.f32 %v790, %v915
        %v977 = vsub.f32 %v792, %v919
        %v978 = vsub.f32 %v796, %v915
        %v979 = vsub.f32 %v798, %v919
        %v980 = vsub.f32 %v800, %v915
        %v981 = vsub.f32 %v802, %v919
        %v982 = vsub.f32 %v806, %v915
        %v983 = vsub.f32 %v808, %v919
        %v984 = vsub.f32 %v810, %v915
        %v985 = vsub.f32 %v812, %v919
        %v986 = vmul.f32 %v922, 1.442695
        %v987 = vpow.pop %v986
        %v988 = vmul.f32 %v923, 1.442695
        %v989 = vpow.pop %v988
        %v990 = vmul.f32 %v924, 1.442695
        %v991 = vpow.pop %v990
        %v992 = vmul.f32 %v925, 1.442695
        %v993 = vpow.pop %v992
        %v994 = vmul.f32 %v926, 1.442695
        %v995 = vpow.pop %v994
        %v996 = vmul.f32 %v927, 1.442695
        %v997 = vpow.pop %v996
        %v998 = vmul.f32 %v928, 1.442695
        %v999 = vpow.pop %v998
        %v1000 = vmul.f32 %v929, 1.442695
        %v1001 = vpow.pop %v1000
        %v1002 = vmul.f32 %v930, 1.442695
        %v1003 = vpow.pop %v1002
        %v1004 = vmul.f32 %v931, 1.442695
        %v1005 = vpow.pop %v1004
        %v1006 = vmul.f32 %v932, 1.442695
        %v1007 = vpow.pop %v1006
        %v1008 = vmul.f32 %v933, 1.442695
        %v1009 = vpow.pop %v1008
        %v1010 = vmul.f32 %v934, 1.442695
        %v1011 = vpow.pop %v1010
        %v1012 = vmul.f32 %v935, 1.442695
        %v1013 = vpow.pop %v1012
        %v1014 = vmul.f32 %v936, 1.442695
        %v1015 = vpow.pop %v1014
        %v1016 = vmul.f32 %v937, 1.442695
        %v1017 = vpow.pop %v1016
        %v1018 = vmul.f32 %v938, 1.442695
        %v1019 = vpow.pop %v1018
        %v1020 = vmul.f32 %v939, 1.442695
        %v1021 = vpow.pop %v1020
        %v1022 = vmul.f32 %v940, 1.442695
        %v1023 = vpow.pop %v1022
        %v1024 = vmul.f32 %v941, 1.442695
        %v1025 = vpow.pop %v1024
        %v1026 = vmul.f32 %v942, 1.442695
        %v1027 = vpow.pop %v1026
        %v1028 = vmul.f32 %v943, 1.442695
        %v1029 = vpow.pop %v1028
        %v1030 = vmul.f32 %v944, 1.442695
        %v1031 = vpow.pop %v1030
        %v1032 = vmul.f32 %v945, 1.442695
        %v1033 = vpow.pop %v1032
        %v1034 = vmul.f32 %v946, 1.442695
        %v1035 = vpow.pop %v1034
        %v1036 = vmul.f32 %v947, 1.442695
        %v1037 = vpow.pop %v1036
        %v1038 = vmul.f32 %v948, 1.442695
        %v1039 = vpow.pop %v1038
        %v1040 = vmul.f32 %v949, 1.442695
        %v1041 = vpow.pop %v1040
        %v1042 = vmul.f32 %v950, 1.442695
        %v1043 = vpow.pop %v1042
        %v1044 = vmul.f32 %v951, 1.442695
        %v1045 = vpow.pop %v1044
        %v1046 = vmul.f32 %v952, 1.442695
        %v1047 = vpow.pop %v1046
        %v1048 = vmul.f32 %v953, 1.442695
        %v1049 = vpow.pop %v1048
        %v1050 = vmul.f32 %v954, 1.442695
        %v1051 = vpow.pop %v1050
        %v1052 = vmul.f32 %v955, 1.442695
        %v1053 = vpow.pop %v1052
        %v1054 = vmul.f32 %v956, 1.442695
        %v1055 = vpow.pop %v1054
        %v1056 = vmul.f32 %v957, 1.442695
        %v1057 = vpow.pop %v1056
        %v1058 = vmul.f32 %v958, 1.442695
        %v1059 = vpow.pop %v1058
        %v1060 = vmul.f32 %v959, 1.442695
        %v1061 = vpow.pop %v1060
        %v1062 = vmul.f32 %v960, 1.442695
        %v1063 = vpow.pop %v1062
        %v1064 = vmul.f32 %v961, 1.442695
        %v1065 = vpow.pop %v1064
        %v1066 = vmul.f32 %v962, 1.442695
        %v1067 = vpow.pop %v1066
        %v1068 = vmul.f32 %v963, 1.442695
        %v1069 = vpow.pop %v1068
        %v1070 = vmul.f32 %v964, 1.442695
        %v1071 = vpow.pop %v1070
        %v1072 = vmul.f32 %v965, 1.442695
        %v1073 = vpow.pop %v1072
        %v1074 = vmul.f32 %v966, 1.442695
        %v1075 = vpow.pop %v1074
        %v1076 = vmul.f32 %v967, 1.442695
        %v1077 = vpow.pop %v1076
        %v1078 = vmul.f32 %v968, 1.442695
        %v1079 = vpow.pop %v1078
        %v1080 = vmul.f32 %v969, 1.442695
        %v1081 = vpow.pop %v1080
        %v1082 = vmul.f32 %v970, 1.442695
        %v1083 = vpow.pop %v1082
        %v1084 = vmul.f32 %v971, 1.442695
        %v1085 = vpow.pop %v1084
        %v1086 = vmul.f32 %v972, 1.442695
        %v1087 = vpow.pop %v1086
        %v1088 = vmul.f32 %v973, 1.442695
        %v1089 = vpow.pop %v1088
        %v1090 = vmul.f32 %v974, 1.442695
        %v1091 = vpow.pop %v1090
        %v1092 = vmul.f32 %v975, 1.442695
        %v1093 = vpow.pop %v1092
        %v1094 = vmul.f32 %v976, 1.442695
        %v1095 = vpow.pop %v1094
        %v1096 = vmul.f32 %v977, 1.442695
        %v1097 = vpow.pop %v1096
        %v1098 = vmul.f32 %v978, 1.442695
        %v1099 = vpow.pop %v1098
        %v1100 = vmul.f32 %v979, 1.442695
        %v1101 = vpow.pop %v1100
        %v1102 = vmul.f32 %v980, 1.442695
        %v1103 = vpow.pop %v1102
        %v1104 = vmul.f32 %v981, 1.442695
        %v1105 = vpow.pop %v1104
        %v1106 = vmul.f32 %v982, 1.442695
        %v1107 = vpow.pop %v1106
        %v1108 = vmul.f32 %v983, 1.442695
        %v1109 = vpow.pop %v1108
        %v1110 = vmul.f32 %v984, 1.442695
        %v1111 = vpow.pop %v1110
        %v1112 = vmul.f32 %v985, 1.442695
        %v1113 = vpow.pop %v1112
        %v1114 = vld [vmem:[%s5] sm:$0xf]
        %v1115 = vld [vmem:[%s5 + $0x4] sm:$0xf]
        %v1116 = vld [vmem:[%s5 + $0x8] sm:$0x1]
        %v1117 = vld [vmem:[%s6] sm:$0xff]
        %v1118 = vld [vmem:[%s6 + $0x8] sm:$0xff]
        %v1119 = vld [vmem:[%s6 + $0x10] sm:$0x1]
        %1121 = vset.pattern.permute.xlu0 0
        %1122 = vperm.xlu0 %1121, %v1117
        %v1123 = vpop.permute.xlu0 %1122
        %1126 = vset.pattern.permute.xlu0 0
        %1127 = vperm.xlu0 %1126, %v1118
        %v1128 = vpop.permute.xlu0 %1127
        %1131 = vset.pattern.permute.xlu0 0
        %1132 = vperm.xlu0 %1131, %v1119
        %v1133 = vpop.permute.xlu0 %1132
        %v1138 = vunpack.c.l.b16 %v1114
        %v1139 = vunpack.c.l.b16 %v1115
        %v1140 = vunpack.c.l.b16 %v1116
        %v1141 = vpack.c.b16 %v1139, %v1138
        %v1142 = vpack.c.b16 %v1140, %v1140
        %v1144 = vsel %vm444, %v1141, 0
        %v1147 = vsel %vm444, %v1142, 0
        %1149 = vmatprep.subr.bf16.mxu0 %v424
        %1150 = vmatpush1.bf16.msra.mxu0 %v423
        %1151 = vmatprep.subr.bf16.mxu0 0
        %1152 = vmatpush1.bf16.msra.mxu0 0
        %1153 = vmatprep.subr.bf16.mxu0 0
        %1154 = vmatpush1.bf16.msra.mxu0 0
        %1155 = vmatprep.subr.bf16.mxu0 0
        %1156 = vmatpush1.bf16.msra.mxu0 0
        %1157 = vmatprep.subr.bf16.mxu0 0
        %1158 = vmatpush1.bf16.msra.mxu0 0
        %1159 = vmatprep.subr.bf16.mxu0 0
        %1160 = vmatpush1.bf16.msra.mxu0 0
        %1161 = vmatprep.subr.bf16.mxu0 0
        %1162 = vmatpush1.bf16.msra.mxu0 0
        %1163 = vmatprep.subr.bf16.mxu0 0
        %1164 = vmatpush1.bf16.msra.mxu0 0
        %1165 = vmatprep.subr.bf16.mxu0 0
        %1166 = vmatpush1.bf16.msra.mxu0 0
        %1167 = vmatprep.subr.bf16.mxu0 0
        %1168 = vmatpush1.bf16.msra.mxu0 0
        %1169 = vmatprep.subr.bf16.mxu0 0
        %1170 = vmatpush1.bf16.msra.mxu0 0
        %1171 = vmatprep.subr.bf16.mxu0 0
        %1172 = vmatpush1.bf16.msra.mxu0 0
        %1173 = vmatprep.subr.bf16.mxu0 0
        %1174 = vmatpush1.bf16.msra.mxu0 0
        %1175 = vmatprep.subr.bf16.mxu0 0
        %1176 = vmatpush1.bf16.msra.mxu0 0
        %1177 = vmatprep.subr.bf16.mxu0 0
        %1178 = vmatpush1.bf16.msra.mxu0 0
        %1179 = vmatprep.subr.bf16.mxu0 0
        %1180 = vmatpush1.bf16.msra.mxu0 0
        %1181 = vmatprep.mubr.bf16.mxu0 0
        %1182 = vmatmul.mubr.bf16.gmra.mrb[0].mxu0 %v1144
        %v1183 = vpop.f32.mrb[0].mxu0
        %v1184 = vadd.f32 %v1123, %v1183
        %v1185 = vpop.f32.mrb[0].mxu0
        %v1186 = vadd.f32 %v1123, %v1185
        %v1187 = vpop.f32.mrb[0].mxu0
        %v1188 = vadd.f32 %v1128, %v1187
        %v1189 = vpop.f32.mrb[0].mxu0
        %v1190 = vadd.f32 %v1128, %v1189
        %1191 = vmatprep.mubr.bf16.mxu0 0
        %1192 = vmatmul.mubr.bf16.gmra.mrb[0].mxu0 %v1147
        %v1193 = vpop.f32.mrb[0].mxu0
        %v1194 = vadd.f32 %v1133, %v1193
        %v1195 = vpop.f32.mrb[0].mxu0
        %v1196 = vadd.f32 %v1133, %v1195
        %v1197 = vpop.f32.mrb[0].mxu0
        %v1198 = vpop.f32.mrb[0].mxu0
        %1199 = vdwg.mxu0
        %v1200 = vpack.c.bf16 %v1188, %v1184
        %v1201 = vpack.c.bf16 %v1190, %v1186
        %v1202 = vpack.c.bf16 %v1194, %v1194
        %v1203 = vpack.c.bf16 %v1196, %v1196
        %v1204 = vpack.c.bf16 %v991, %v987
        %v1205 = vpack.c.bf16 %v993, %v989
        %v1206 = vpack.c.bf16 %v999, %v995
        %v1207 = vpack.c.bf16 %v1001, %v997
        %v1208 = vpack.c.bf16 %v1007, %v1003
        %v1209 = vpack.c.bf16 %v1009, %v1005
        %v1210 = vpack.c.bf16 %v1015, %v1011
        %v1211 = vpack.c.bf16 %v1017, %v1013
        %v1212 = vpack.c.bf16 %v1023, %v1019
        %v1213 = vpack.c.bf16 %v1025, %v1021
        %v1214 = vpack.c.bf16 %v1031, %v1027
        %v1215 = vpack.c.bf16 %v1033, %v1029
        %v1216 = vpack.c.bf16 %v1039, %v1035
        %v1217 = vpack.c.bf16 %v1041, %v1037
        %v1218 = vpack.c.bf16 %v1047, %v1043
        %v1219 = vpack.c.bf16 %v1049, %v1045
        %v1220 = vpack.c.bf16 %v1055, %v1051
        %v1221 = vpack.c.bf16 %v1057, %v1053
        %v1222 = vpack.c.bf16 %v1063, %v1059
        %v1223 = vpack.c.bf16 %v1065, %v1061
        %v1224 = vpack.c.bf16 %v1071, %v1067
        %v1225 = vpack.c.bf16 %v1073, %v1069
        %v1226 = vpack.c.bf16 %v1079, %v1075
        %v1227 = vpack.c.bf16 %v1081, %v1077
        %v1228 = vpack.c.bf16 %v1087, %v1083
        %v1229 = vpack.c.bf16 %v1089, %v1085
        %v1230 = vpack.c.bf16 %v1095, %v1091
        %v1231 = vpack.c.bf16 %v1097, %v1093
        %v1232 = vpack.c.bf16 %v1103, %v1099
        %v1233 = vpack.c.bf16 %v1105, %v1101
        %v1234 = vpack.c.bf16 %v1111, %v1107
        %v1235 = vpack.c.bf16 %v1113, %v1109
        %1236 = vmatprep.subr.bf16.mxu0 %v1205
        %1237 = vmatpush1.bf16.msra.mxu0 %v1204
        %1238 = vmatprep.subr.bf16.mxu0 %v1207
        %1239 = vmatpush1.bf16.msra.mxu0 %v1206
        %1240 = vmatprep.subr.bf16.mxu0 %v1209
        %1241 = vmatpush1.bf16.msra.mxu0 %v1208
        %1242 = vmatprep.subr.bf16.mxu0 %v1211
        %1243 = vmatpush1.bf16.msra.mxu0 %v1210
        %1244 = vmatprep.subr.bf16.mxu0 %v1213
        %1245 = vmatpush1.bf16.msra.mxu0 %v1212
        %1246 = vmatprep.subr.bf16.mxu0 %v1215
        %1247 = vmatpush1.bf16.msra.mxu0 %v1214
        %1248 = vmatprep.subr.bf16.mxu0 %v1217
        %1249 = vmatpush1.bf16.msra.mxu0 %v1216
        %1250 = vmatprep.subr.bf16.mxu0 %v1219
        %1251 = vmatpush1.bf16.msra.mxu0 %v1218
        %1252 = vmatprep.subr.bf16.mxu0 %v1221
        %1253 = vmatpush1.bf16.msra.mxu0 %v1220
        %1254 = vmatprep.subr.bf16.mxu0 %v1223
        %1255 = vmatpush1.bf16.msra.mxu0 %v1222
        %1256 = vmatprep.subr.bf16.mxu0 %v1225
        %1257 = vmatpush1.bf16.msra.mxu0 %v1224
        %1258 = vmatprep.subr.bf16.mxu0 %v1227
        %1259 = vmatpush1.bf16.msra.mxu0 %v1226
        %1260 = vmatprep.subr.bf16.mxu0 %v1229
        %1261 = vmatpush1.bf16.msra.mxu0 %v1228
        %1262 = vmatprep.subr.bf16.mxu0 %v1231
        %1263 = vmatpush1.bf16.msra.mxu0 %v1230
        %1264 = vmatprep.subr.bf16.mxu0 %v1233
        %1265 = vmatpush1.bf16.msra.mxu0 %v1232
        %1266 = vmatprep.subr.bf16.mxu0 %v1235
        %1267 = vmatpush1.bf16.msra.mxu0 %v1234
        %1268 = vmatprep.mubr.bf16.mxu0 %v1201
        %1269 = vmatmul.mubr.bf16.gmra.mrb[0].mxu0 %v1200
        %v1270 = vpop.f32.mrb[0].mxu0
        %v1271 = vadd.f32 0.0, %v1270
        %v1272 = vpop.f32.mrb[0].mxu0
        %v1273 = vadd.f32 0.0, %v1272
        %v1274 = vpop.f32.mrb[0].mxu0
        %v1275 = vadd.f32 0.0, %v1274
        %v1276 = vpop.f32.mrb[0].mxu0
        %v1277 = vadd.f32 0.0, %v1276
        %1278 = vmatprep.mubr.bf16.mxu0 %v1203
        %1279 = vmatmul.mubr.bf16.gmra.mrb[0].mxu0 %v1202
        %v1280 = vpop.f32.mrb[0].mxu0
        %v1281 = vadd.f32 0.0, %v1280
        %v1282 = vpop.f32.mrb[0].mxu0
        %v1283 = vadd.f32 0.0, %v1282
        %v1284 = vpop.f32.mrb[0].mxu0
        %v1285 = vpop.f32.mrb[0].mxu0
        %1286 = vdwg.mxu0
        %v1287 = vld [vmem:[#allocation3] sm:$0xff]
        %v1288 = vld [vmem:[#allocation3 + $0x8] sm:$0xff]
        %v1289 = vld [vmem:[#allocation3 + $0x10] sm:$0xff]
        %v1290 = vld [vmem:[#allocation3 + $0x18] sm:$0xff]
        %v1291 = vld [vmem:[#allocation3 + $0x20] sm:$0x1]
        %v1292 = vld [vmem:[#allocation3 + $0x28] sm:$0x1]
        %v1294 = vlaneseq
        %v1295 = vshrl.u32 %v1294, 7
        %v1296 = vsub.s32 0, %v1295
        %v1297 = vrot.slane %v910, %v1296
        %v1298 = vlaneseq
        %v1299 = vshrl.u32 %v1298, 7
        %v1300 = vsub.s32 1, %v1299
        %v1301 = vrot.slane %v910, %v1300
        %v1304 = vmul.f32 %v1297, %v1287
        %v1305 = vmul.f32 %v1301, %v1288
        %v1306 = vmul.f32 %v1297, %v1289
        %v1307 = vmul.f32 %v1301, %v1290
        %v1308 = vmul.f32 %v1297, %v1291
        %v1309 = vmul.f32 %v1301, %v1292
        %v1310 = vadd.f32 %v1304, %v1271
        %v1311 = vadd.f32 %v1305, %v1273
        %v1312 = vadd.f32 %v1306, %v1275
        %v1313 = vadd.f32 %v1307, %v1277
        %v1314 = vadd.f32 %v1308, %v1281
        %v1315 = vadd.f32 %v1309, %v1283
        %1316 = vst [vmem:[#allocation3] sm:$0xff] %v1310
        %1317 = vst [vmem:[#allocation3 + $0x8] sm:$0xff] %v1311
        %1318 = vst [vmem:[#allocation3 + $0x10] sm:$0xff] %v1312
        %1319 = vst [vmem:[#allocation3 + $0x18] sm:$0xff] %v1313
        %1320 = vst [vmem:[#allocation3 + $0x20] sm:$0x1] %v1314
        %1321 = vst [vmem:[#allocation3 + $0x28] sm:$0x1] %v1315
        %v1322 = vlaneseq
        %vm1323 = vcmp.ge.s32.totalorder %v1322, 0
        %vm1324 = vcmp.lt.s32.totalorder %v1322, 256
        %vm1325 = vmand %vm1323, %vm1324
        %1326 = vst.msk [vmem:[#allocation2] sm:$0x3] %vm1325, %v907
        // Predicated region
        $region65: #{tpu_custom_call.1} parent=51 // pred_check
          %p1327 = pneg %p398
        $region66: #{tpu_custom_call.1} parent=51 // pred_check_branch
          %1329 = sbr.rel (%p1327) target = $region68
        $region67: #{tpu_custom_call.1} parent=51 // pred_region
          %v1330 = vld [vmem:[#allocation3] sm:$0xff]
          %v1331 = vld [vmem:[#allocation3 + $0x8] sm:$0xff]
          %v1332 = vld [vmem:[#allocation3 + $0x10] sm:$0xff]
          %v1333 = vld [vmem:[#allocation3 + $0x18] sm:$0xff]
          %v1334 = vld [vmem:[#allocation3 + $0x20] sm:$0x1]
          %v1335 = vld [vmem:[#allocation3 + $0x28] sm:$0x1]
          %v1336 = vrcp.pop %v1334
          %v1337 = vrcp.pop %v1335
          %s1338 = sld [smem:[#allocation4]]
          %v1339 = vlaneseq
          %v1340 = vshrl.u32 %v1339, 7
          %v1341 = vsub.s32 0, %v1340
          %v1342 = vrot.slane %v1336, %v1341
          %v1343 = vlaneseq
          %v1344 = vshrl.u32 %v1343, 7
          %v1345 = vsub.s32 0, %v1344
          %v1346 = vrot.slane %v1337, %v1345
          %v1347 = vmul.f32 %v1330, %v1342
          %v1348 = vmul.f32 %v1331, %v1346
          %v1349 = vmul.f32 %v1332, %v1342
          %v1350 = vmul.f32 %v1333, %v1346
          %v1351 = vstv %s1338
          %v1352 = vmul.f32 %v1351, %v1347
          %v1353 = vmul.f32 %v1351, %v1348
          %v1354 = vmul.f32 %v1351, %v1349
          %v1355 = vmul.f32 %v1351, %v1350
          %v1356 = vadd.f32 %v1352, %v413
          %v1357 = vadd.f32 %v1353, %v414
          %v1358 = vadd.f32 %v1354, %v415
          %v1359 = vadd.f32 %v1355, %v416
          %1360 = vst [vmem:[%s393] sm:$0xff] %v1356
          %1361 = vst [vmem:[%s393 + $0x8] sm:$0xff] %v1357
          %1362 = vst [vmem:[%s393 + $0x10] sm:$0xff] %v1358
          %1363 = vst [vmem:[%s393 + $0x18] sm:$0xff] %v1359
        $region68: #{tpu_custom_call.1} parent=51 // pred_fallthru
          _
        %s1364 = sand.u32 %s240, 1
        %s1365 = scalar_lea.sflag [#allocation7], %s1364
        %s1366 = sand.u32 %s240, 1
        %s1367 = smul.addr %s1366, 32
        %s1368 = scalar_lea.vmem [#allocation10], %s1367
        // Predicated region
        $region69: #{tpu_custom_call.1} parent=51 // pred_check
          %p1369 = pneg %p250
        $region70: #{tpu_custom_call.1} parent=51 // pred_check_branch
          %1371 = sbr.rel (%p1369) target = $region72
        $region71: #{tpu_custom_call.1} parent=51 // pred_region
          %s1372 = smul.u32 2, %s35
          %s1374 = ssub.s32 512, 512
          %1375 = vsyncadd %s1365, %s1374
          %s1376 = smul.addr %s34, 4
          %s1377 = sadd.s32 %s1372, %s1376
          %s1378 = smul.addr %s1377, 128
          %s1379 = scalar_lea.hbm %s8, %s1378
          %s1380 = sshll.u32 %s1368, 4
          %s1381 = int_to_ptr.vmem [resolvable:$true] %s1380
          %1386 = dma.vmem_to_hbm [thread:$0]  %s1381, 512, %s1379, %s1365, 256, 256, 16
        $region72: #{tpu_custom_call.1} parent=51 // pred_fallthru
          _
      $region52: #{tpu_custom_call.1} parent=5 // pred_fallthru
        _
      %p1387 = scmp.le.s32.totalorder 2, %s24
      // Predicated region
      $region73: #{tpu_custom_call.1} parent=5 // pred_check
        %p1388 = pneg %p1387
      $region74: #{tpu_custom_call.1} parent=5 // pred_check_branch
        %1390 = sbr.rel (%p1388) target = $region76
      $region75: #{tpu_custom_call.1} parent=5 // pred_region
        %s1391 = ssub.s32 %s24, 2
        // Predicated region
        $region77: #{tpu_custom_call.1} parent=75 // pred_check
          %p1392 = pneg %p256
        $region78: #{tpu_custom_call.1} parent=75 // pred_check_branch
          %1394 = sbr.rel (%p1392) target = $region80
        $region79: #{tpu_custom_call.1} parent=75 // pred_region
          %s1395 = sand.u32 %s241, 1
          %s1396 = scalar_lea.sflag [#allocation7], %s1395
          %s1397 = sand.u32 %s241, 1
          %s1398 = smul.addr %s1397, 32
          %s1399 = scalar_lea.vmem [#allocation10], %s1398
          %1400 = dma.done %s1396, 512
        $region80: #{tpu_custom_call.1} parent=75 // pred_fallthru
          _
      $region76: #{tpu_custom_call.1} parent=5 // pred_fallthru
        _
    $region6: #{tpu_custom_call.1} parent=1 // loop_footer
      %s28 = sadd.s32 1, %s24
    $region7: #{tpu_custom_call.1} parent=1 // loop_footer_branch
      %23 = sbr.rel target = $region3
    $region8: #{tpu_custom_call.1} parent=1 // loop_exit
      _
    %1401 = vsyncpa [#allocation6], 1
    %s1402 = scalar_lea.sflag [#allocation6], 1
    %1403 = vsyncpa %s1402, 1
    %1404 = vsyncpa [#allocation9], 1
    %s1405 = scalar_lea.sflag [#allocation9], 1
    %1406 = vsyncpa %s1405, 1
    %1407 = vsyncpa [#allocation7], 1
    %s1408 = scalar_lea.sflag [#allocation7], 1
    %1409 = vsyncpa %s1408, 1

</llo_original>
